<compile_context>
chip_gen: v5e
topology: v5e:2x2
jax: 0.10.0
libtpu: 0.0.40
codegen_flags: <defaults>
</compile_context>

<pallas_src>
import numpy as np
import jax
import jax.numpy as jnp
from jax.experimental import pallas as pl
from jax.experimental.pallas import tpu as pltpu

# ---- model / problem sizes (small, consistent with the module's forward) ----
B, S_DEC, S_ENC, E, H, F = 2, 8, 16, 32, 4, 64   # batch, tgt seq, src seq, emb, heads, ffn
DH = E // H                                      # head dim
BN_EPS = 1e-6
NEG_INF = -1e30


def _full_spec(shape):
    n = len(shape)
    return pl.BlockSpec(shape, lambda i, _n=n: (0,) * _n)


def _mha(q3, k3, v3, bias, lq, lk):
    """Multi-head attention, batched over B.  q3:(B,lq,E), k3/v3:(B,lk,E),
    bias:(B,lq,lk) additive.  Returns ((B*lq,E) context, (B,lq,lk) avg weights)."""
    scale = 1.0 / float(np.sqrt(DH))
    ctx_heads = []
    attn_sum = jnp.zeros((B, lq, lk), jnp.float32)
    for h in range(H):                     # static, H=4: a few batched MXU pushes
        sl = slice(h * DH, (h + 1) * DH)
        qh, kh, vh = q3[:, :, sl], k3[:, :, sl], v3[:, :, sl]
        s = jnp.einsum('bqd,bkd->bqk', qh, kh,
                       preferred_element_type=jnp.float32) * scale + bias
        s = s - jnp.max(s, axis=-1, keepdims=True)
        p = jnp.exp(s)
        p = p * pl.reciprocal(jnp.sum(p, axis=-1, keepdims=True), approx=True)
        attn_sum = attn_sum + p
        ctx_heads.append(jnp.einsum('bqk,bkd->bqd', p, vh,
                                    preferred_element_type=jnp.float32))
    ctx = jnp.concatenate(ctx_heads, axis=-1)            # (B, lq, E), lane-dense
    return ctx.reshape(B * lq, E), attn_sum * (1.0 / H)  # avg over heads (PyTorch default)


# ------------------------------ the Pallas kernel ----------------------------
def decoder_layer_kernel(x_ref, enc_ref, bias1_ref, bias2_ref,
                         wqkv1_ref, bqkv1_ref, wo1_ref, bo1_ref,
                         wq2_ref, bq2_ref, wkv2_ref, bkv2_ref, wo2_ref, bo2_ref,
                         w1_ref, b1_ref, w2_ref, b2_ref,
                         bn1s_ref, bn1t_ref, bn2s_ref, bn2t_ref,
                         bn3s_ref, bn3t_ref,
                         out_ref, attn1_ref, attn2_ref):
    x = x_ref[...]                                       # (B*S_DEC, E)
    enc = enc_ref[...]                                   # (B*S_ENC, E)

    # ---- block 1: masked self-attention (fused QKV in-projection) ----
    qkv = jnp.dot(x, wqkv1_ref[...],
                  preferred_element_type=jnp.float32) + bqkv1_ref[...]
    q1 = qkv[:, 0 * E:1 * E].reshape(B, S_DEC, E)
    k1 = qkv[:, 1 * E:2 * E].reshape(B, S_DEC, E)
    v1 = qkv[:, 2 * E:3 * E].reshape(B, S_DEC, E)
    ctx1, attn1 = _mha(q1, k1, v1, bias1_ref[...], S_DEC, S_DEC)
    mha1 = jnp.dot(ctx1, wo1_ref[...],
                   preferred_element_type=jnp.float32) + bo1_ref[...]
    # residual + "layernorm1" (BatchNorm1d, eval: per-channel affine)
    Q1 = (x + mha1) * bn1s_ref[...] + bn1t_ref[...]

    # ---- block 2: cross-attention with encoder output (fused K|V proj) ----
    q2 = (jnp.dot(Q1, wq2_ref[...],
                  preferred_element_type=jnp.float32) + bq2_ref[...]
          ).reshape(B, S_DEC, E)
    kv2 = jnp.dot(enc, wkv2_ref[...],
                  preferred_element_type=jnp.float32) + bkv2_ref[...]
    k2 = kv2[:, 0 * E:1 * E].reshape(B, S_ENC, E)
    v2 = kv2[:, 1 * E:2 * E].reshape(B, S_ENC, E)
    ctx2, attn2 = _mha(q2, k2, v2, bias2_ref[...], S_DEC, S_ENC)
    mha2 = jnp.dot(ctx2, wo2_ref[...],
                   preferred_element_type=jnp.float32) + bo2_ref[...]
    # residual + "layernorm2" (BatchNorm1d, eval)
    Y2 = (Q1 + mha2) * bn2s_ref[...] + bn2t_ref[...]

    # ---- FFN: relu(fc1) -> relu(fc2); dropout_ffn is eval-mode identity ----
    # TODO(synk): nn.Dropout (both in MHA and FFN) is stochastic at train time;
    #             eval-mode identity implemented here.
    h1 = jnp.maximum(jnp.dot(Y2, w1_ref[...],
                             preferred_element_type=jnp.float32) + b1_ref[...], 0.0)
    h2 = jnp.maximum(jnp.dot(h1, w2_ref[...],
                             preferred_element_type=jnp.float32) + b2_ref[...], 0.0)

    # residual + "layernorm3" (BatchNorm1d, eval)
    out3 = (Y2 + h2) * bn3s_ref[...] + bn3t_ref[...]

    out_ref[...] = out3
    attn1_ref[...] = attn1
    attn2_ref[...] = attn2


# --------------------------------- wrapper -----------------------------------
def decoder_layer_forward(x, enc_output, look_ahead_mask,
                          padding_mask_dec_query, padding_mask_enc_key, p):
    # glue: combine boolean masks into additive biases (plain JAX, host side)
    la_bias = jnp.where(look_ahead_mask, NEG_INF, 0.0).astype(jnp.float32)        # (S_DEC,S_DEC)
    dec_bias = jnp.where(padding_mask_dec_query, NEG_INF, 0.0).astype(jnp.float32)  # (B,S_DEC)
    enc_bias = jnp.where(padding_mask_enc_key, NEG_INF, 0.0).astype(jnp.float32)    # (B,S_ENC)
    bias1 = la_bias[None, :, :] + dec_bias[:, None, :]                            # (B,S_DEC,S_DEC)
    bias2 = jnp.broadcast_to(enc_bias[:, None, :], (B, S_DEC, S_ENC))             # (B,S_DEC,S_ENC)

    x2d = x.reshape(B * S_DEC, E).astype(jnp.float32)
    enc2d = enc_output.reshape(B * S_ENC, E).astype(jnp.float32)

    args = (x2d, enc2d, bias1, bias2,
            p['wqkv1'], p['bqkv1'], p['wo1'], p['bo1'],
            p['wq2'], p['bq2'], p['wkv2'], p['bkv2'], p['wo2'], p['bo2'],
            p['w1'], p['b1'], p['w2'], p['b2'],
            p['bn1_scale'], p['bn1_shift'], p['bn2_scale'], p['bn2_shift'],
            p['bn3_scale'], p['bn3_shift'])
    in_specs = [_full_spec(a.shape) for a in args]
    out_shape = (jax.ShapeDtypeStruct((B * S_DEC, E), jnp.float32),
                 jax.ShapeDtypeStruct((B, S_DEC, S_DEC), jnp.float32),
                 jax.ShapeDtypeStruct((B, S_DEC, S_ENC), jnp.float32))
    out_specs = [_full_spec((B * S_DEC, E)),
                 _full_spec((B, S_DEC, S_DEC)),
                 _full_spec((B, S_DEC, S_ENC))]

    out3_2d, attn1, attn2 = pl.pallas_call(
        decoder_layer_kernel,
        out_shape=out_shape,
        grid_spec=pltpu.PrefetchScalarGridSpec(
            num_scalar_prefetch=0,
            grid=(1,),
            in_specs=in_specs,
            out_specs=out_specs),
        compiler_params=pltpu.CompilerParams(
            dimension_semantics=("arbitrary",)),
    )(*args)
    return out3_2d.reshape(B, S_DEC, E), attn1, attn2


# ----------------------- deterministic parameter init ------------------------
def init_params(key):
    k = jax.random.split(key, 18)
    # mha1 (self-attention): nn.MultiheadAttention parameterization
    in_w1 = 0.08 * jax.random.normal(k[0], (3 * E, E), jnp.float32)
    in_b1 = 0.02 * jax.random.normal(k[1], (3 * E,), jnp.float32)
    wo1 = 0.08 * jax.random.normal(k[2], (E, E), jnp.float32)
    bo1 = 0.02 * jax.random.normal(k[3], (E,), jnp.float32)
    # mha2 (cross-attention)
    in_w2 = 0.08 * jax.random.normal(k[4], (3 * E, E), jnp.float32)
    in_b2 = 0.02 * jax.random.normal(k[5], (3 * E,), jnp.float32)
    wo2 = 0.08 * jax.random.normal(k[6], (E, E), jnp.float32)
    bo2 = 0.02 * jax.random.normal(k[7], (E,), jnp.float32)
    # FFN
    w1 = 0.08 * jax.random.normal(k[8], (F, E), jnp.float32)
    b1 = 0.02 * jax.random.normal(k[9], (F,), jnp.float32)
    w2 = 0.08 * jax.random.normal(k[10], (E, F), jnp.float32)
    b2 = 0.02 * jax.random.normal(k[11], (E,), jnp.float32)

    # three BatchNorm1d layers (eval mode -> fold running stats into scale/shift)
    def bn(kg, kb):
        g = 1.0 + 0.1 * jax.random.normal(kg, (E,), jnp.float32)
        be = 0.1 * jax.random.normal(kb, (E,), jnp.float32)
        rm, rv = jnp.zeros((E,), jnp.float32), jnp.ones((E,), jnp.float32)
        s = g / jnp.sqrt(rv + BN_EPS)
        return s[None], (be - rm * s)[None]

    s1, t1 = bn(k[12], k[13])
    s2, t2 = bn(k[14], k[15])
    s3, t3 = bn(k[16], k[17])

    return dict(
        wqkv1=in_w1.T,                           # (E, 3E)  fused q|k|v
        bqkv1=in_b1[None],                       # (1, 3E)
        wo1=wo1.T, bo1=bo1[None],
        wq2=in_w2[:E].T, bq2=in_b2[None, :E],    # (E, E), (1, E)
        wkv2=in_w2[E:].T, bkv2=in_b2[None, E:],  # (E, 2E), (1, 2E) fused k|v
        wo2=wo2.T, bo2=bo2[None],
        w1=w1.T, b1=b1[None], w2=w2.T, b2=b2[None],
        bn1_scale=s1, bn1_shift=t1,
        bn2_scale=s2, bn2_shift=t2,
        bn3_scale=s3, bn3_shift=t3)


if __name__ == "__main__":
    key = jax.random.PRNGKey(0)
    kp, kx, ke = jax.random.split(key, 3)
    params = init_params(kp)
    x = 0.5 * jax.random.normal(kx, (B, S_DEC, E), jnp.float32)
    enc_out = 0.5 * jax.random.normal(ke, (B, S_ENC, E), jnp.float32)

    # look-ahead (causal) mask: True = disallowed (future positions)
    look_ahead_mask = jnp.triu(jnp.ones((S_DEC, S_DEC), jnp.bool_), k=1)
    # key-padding masks: True = padding token (trailing positions padded)
    padding_mask_dec_query = (jnp.zeros((B, S_DEC), jnp.bool_)
                              .at[0, -2:].set(True).at[1, -1:].set(True))
    padding_mask_enc_key = (jnp.zeros((B, S_ENC), jnp.bool_)
                            .at[0, -3:].set(True).at[1, -2:].set(True))

    out3, aw1, aw2 = decoder_layer_forward(x, enc_out, look_ahead_mask,
                                           padding_mask_dec_query,
                                           padding_mask_enc_key, params)
    jax.block_until_ready((out3, aw1, aw2))

    assert out3.shape == (B, S_DEC, E) and out3.dtype == jnp.float32
    assert aw1.shape == (B, S_DEC, S_DEC) and aw2.shape == (B, S_DEC, S_ENC)
    assert bool(jnp.all(jnp.isfinite(out3)))
    assert bool(jnp.all(jnp.isfinite(aw1))) and bool(jnp.all(jnp.isfinite(aw2)))
    print("KERNEL_OK")
</pallas_src>

<mosaic_0001>
module attributes {stable_mosaic.version = 11 : i64} {
  func.func @decoder_layer_kernel(%arg0: i32, %arg1: memref<16x32xf32, #tpu.memory_space<vmem>>, %arg2: memref<32x32xf32, #tpu.memory_space<vmem>>, %arg3: memref<2x8x8xf32, #tpu.memory_space<vmem>>, %arg4: memref<2x8x16xf32, #tpu.memory_space<vmem>>, %arg5: memref<32x96xf32, #tpu.memory_space<vmem>>, %arg6: memref<1x96xf32, #tpu.memory_space<vmem>>, %arg7: memref<32x32xf32, #tpu.memory_space<vmem>>, %arg8: memref<1x32xf32, #tpu.memory_space<vmem>>, %arg9: memref<32x32xf32, #tpu.memory_space<vmem>>, %arg10: memref<1x32xf32, #tpu.memory_space<vmem>>, %arg11: memref<32x64xf32, #tpu.memory_space<vmem>>, %arg12: memref<1x64xf32, #tpu.memory_space<vmem>>, %arg13: memref<32x32xf32, #tpu.memory_space<vmem>>, %arg14: memref<1x32xf32, #tpu.memory_space<vmem>>, %arg15: memref<32x64xf32, #tpu.memory_space<vmem>>, %arg16: memref<1x64xf32, #tpu.memory_space<vmem>>, %arg17: memref<64x32xf32, #tpu.memory_space<vmem>>, %arg18: memref<1x32xf32, #tpu.memory_space<vmem>>, %arg19: memref<1x32xf32, #tpu.memory_space<vmem>>, %arg20: memref<1x32xf32, #tpu.memory_space<vmem>>, %arg21: memref<1x32xf32, #tpu.memory_space<vmem>>, %arg22: memref<1x32xf32, #tpu.memory_space<vmem>>, %arg23: memref<1x32xf32, #tpu.memory_space<vmem>>, %arg24: memref<1x32xf32, #tpu.memory_space<vmem>>, %arg25: memref<16x32xf32, #tpu.memory_space<vmem>>, %arg26: memref<2x8x8xf32, #tpu.memory_space<vmem>>, %arg27: memref<2x8x16xf32, #tpu.memory_space<vmem>>) attributes {dimension_semantics = [#tpu.dimension_semantics<arbitrary>], iteration_bounds = array<i64: 1>, scalar_prefetch = 0 : i64, scratch_operands = 0 : i64, tpu.core_type = #tpu.core_type<tc>, window_params = [{pipeline_mode = #tpu.pipeline_mode<synchronous>, transform_indices = @transform_0, window_bounds = array<i64: 16, 32>}, {pipeline_mode = #tpu.pipeline_mode<synchronous>, transform_indices = @transform_1, window_bounds = array<i64: 32, 32>}, {pipeline_mode = #tpu.pipeline_mode<synchronous>, transform_indices = @transform_2, window_bounds = array<i64: 2, 8, 8>}, {pipeline_mode = #tpu.pipeline_mode<synchronous>, transform_indices = @transform_3, window_bounds = array<i64: 2, 8, 16>}, {pipeline_mode = #tpu.pipeline_mode<synchronous>, transform_indices = @transform_4, window_bounds = array<i64: 32, 96>}, {pipeline_mode = #tpu.pipeline_mode<synchronous>, transform_indices = @transform_5, window_bounds = array<i64: 1, 96>}, {pipeline_mode = #tpu.pipeline_mode<synchronous>, transform_indices = @transform_6, window_bounds = array<i64: 32, 32>}, {pipeline_mode = #tpu.pipeline_mode<synchronous>, transform_indices = @transform_7, window_bounds = array<i64: 1, 32>}, {pipeline_mode = #tpu.pipeline_mode<synchronous>, transform_indices = @transform_8, window_bounds = array<i64: 32, 32>}, {pipeline_mode = #tpu.pipeline_mode<synchronous>, transform_indices = @transform_9, window_bounds = array<i64: 1, 32>}, {pipeline_mode = #tpu.pipeline_mode<synchronous>, transform_indices = @transform_10, window_bounds = array<i64: 32, 64>}, {pipeline_mode = #tpu.pipeline_mode<synchronous>, transform_indices = @transform_11, window_bounds = array<i64: 1, 64>}, {pipeline_mode = #tpu.pipeline_mode<synchronous>, transform_indices = @transform_12, window_bounds = array<i64: 32, 32>}, {pipeline_mode = #tpu.pipeline_mode<synchronous>, transform_indices = @transform_13, window_bounds = array<i64: 1, 32>}, {pipeline_mode = #tpu.pipeline_mode<synchronous>, transform_indices = @transform_14, window_bounds = array<i64: 32, 64>}, {pipeline_mode = #tpu.pipeline_mode<synchronous>, transform_indices = @transform_15, window_bounds = array<i64: 1, 64>}, {pipeline_mode = #tpu.pipeline_mode<synchronous>, transform_indices = @transform_16, window_bounds = array<i64: 64, 32>}, {pipeline_mode = #tpu.pipeline_mode<synchronous>, transform_indices = @transform_17, window_bounds = array<i64: 1, 32>}, {pipeline_mode = #tpu.pipeline_mode<synchronous>, transform_indices = @transform_18, window_bounds = array<i64: 1, 32>}, {pipeline_mode = #tpu.pipeline_mode<synchronous>, transform_indices = @transform_19, window_bounds = array<i64: 1, 32>}, {pipeline_mode = #tpu.pipeline_mode<synchronous>, transform_indices = @transform_20, window_bounds = array<i64: 1, 32>}, {pipeline_mode = #tpu.pipeline_mode<synchronous>, transform_indices = @transform_21, window_bounds = array<i64: 1, 32>}, {pipeline_mode = #tpu.pipeline_mode<synchronous>, transform_indices = @transform_22, window_bounds = array<i64: 1, 32>}, {pipeline_mode = #tpu.pipeline_mode<synchronous>, transform_indices = @transform_23, window_bounds = array<i64: 1, 32>}, {pipeline_mode = #tpu.pipeline_mode<synchronous>, transform_indices = @transform_24, window_bounds = array<i64: 16, 32>}, {pipeline_mode = #tpu.pipeline_mode<synchronous>, transform_indices = @transform_25, window_bounds = array<i64: 2, 8, 8>}, {pipeline_mode = #tpu.pipeline_mode<synchronous>, transform_indices = @transform_26, window_bounds = array<i64: 2, 8, 16>}]} {
    %c0 = arith.constant 0 : index
    %c0_0 = arith.constant 0 : index
    %0 = vector.load %arg1[%c0, %c0_0] : memref<16x32xf32, #tpu.memory_space<vmem>>, vector<16x32xf32>
    %c0_1 = arith.constant 0 : index
    %c0_2 = arith.constant 0 : index
    %1 = vector.load %arg2[%c0_1, %c0_2] : memref<32x32xf32, #tpu.memory_space<vmem>>, vector<32x32xf32>
    %c0_3 = arith.constant 0 : index
    %c0_4 = arith.constant 0 : index
    %2 = vector.load %arg5[%c0_3, %c0_4] : memref<32x96xf32, #tpu.memory_space<vmem>>, vector<32x96xf32>
    %cst = arith.constant dense<0.000000e+00> : vector<16x96xf32>
    %3 = tpu.matmul %0, %2, %cst {dimension_numbers = #tpu.dot_dimension_numbers<[1], [0], [0], [1], [0, 0, 1, 1], [], []>} : vector<16x32xf32>, vector<32x96xf32>, vector<16x96xf32> -> vector<16x96xf32>
    %c0_5 = arith.constant 0 : index
    %c0_6 = arith.constant 0 : index
    %4 = vector.load %arg6[%c0_5, %c0_6] : memref<1x96xf32, #tpu.memory_space<vmem>>, vector<1x96xf32>
    %5 = vector.broadcast %4 : vector<1x96xf32> to vector<16x96xf32>
    %6 = arith.addf %3, %5 : vector<16x96xf32>
    %7 = vector.extract_strided_slice %6 {offsets = [0, 0], sizes = [16, 32], strides = [1, 1]} : vector<16x96xf32> to vector<16x32xf32>
    %8 = vector.shape_cast %7 : vector<16x32xf32> to vector<2x8x32xf32>
    %9 = vector.extract_strided_slice %6 {offsets = [0, 32], sizes = [16, 32], strides = [1, 1]} : vector<16x96xf32> to vector<16x32xf32>
    %10 = vector.shape_cast %9 : vector<16x32xf32> to vector<2x8x32xf32>
    %11 = vector.extract_strided_slice %6 {offsets = [0, 64], sizes = [16, 32], strides = [1, 1]} : vector<16x96xf32> to vector<16x32xf32>
    %12 = vector.shape_cast %11 : vector<16x32xf32> to vector<2x8x32xf32>
    %c0_7 = arith.constant 0 : index
    %c0_8 = arith.constant 0 : index
    %c0_9 = arith.constant 0 : index
    %13 = vector.load %arg3[%c0_7, %c0_8, %c0_9] : memref<2x8x8xf32, #tpu.memory_space<vmem>>, vector<2x8x8xf32>
    %cst_10 = arith.constant 0.000000e+00 : f32
    %14 = vector.broadcast %cst_10 : f32 to vector<2x8x8xf32>
    %15 = vector.extract_strided_slice %8 {offsets = [0, 0, 0], sizes = [2, 8, 8], strides = [1, 1, 1]} : vector<2x8x32xf32> to vector<2x8x8xf32>
    %16 = vector.extract_strided_slice %10 {offsets = [0, 0, 0], sizes = [2, 8, 8], strides = [1, 1, 1]} : vector<2x8x32xf32> to vector<2x8x8xf32>
    %17 = vector.extract_strided_slice %12 {offsets = [0, 0, 0], sizes = [2, 8, 8], strides = [1, 1, 1]} : vector<2x8x32xf32> to vector<2x8x8xf32>
    "tpu.trace_start"() <{level = 10 : i32, message = "bqd,bkd->bqk"}> : () -> ()
    %cst_11 = arith.constant dense<0.000000e+00> : vector<2x8x8xf32>
    %18 = tpu.matmul %15, %16, %cst_11 {dimension_numbers = #tpu.dot_dimension_numbers<[2], [2], [1], [1], [0, 0, 0, 1, 1, 1], [0], [0]>} : vector<2x8x8xf32>, vector<2x8x8xf32>, vector<2x8x8xf32> -> vector<2x8x8xf32>
    "tpu.trace_stop"() : () -> ()
    %cst_12 = arith.constant 0.353553385 : f32
    %19 = vector.broadcast %cst_12 : f32 to vector<2x8x8xf32>
    %20 = arith.mulf %18, %19 : vector<2x8x8xf32>
    %21 = arith.addf %20, %13 : vector<2x8x8xf32>
    %cst_13 = arith.constant dense<0xFF800000> : vector<2x8xf32>
    %22 = vector.multi_reduction <maximumf>, %21, %cst_13 [2] : vector<2x8x8xf32> to vector<2x8xf32>
    %23 = vector.shape_cast %22 : vector<2x8xf32> to vector<2x8x1xf32>
    %24 = vector.broadcast %23 : vector<2x8x1xf32> to vector<2x8x8xf32>
    %25 = arith.subf %21, %24 : vector<2x8x8xf32>
    %26 = math.exp %25 : vector<2x8x8xf32>
    %cst_14 = arith.constant dense<0.000000e+00> : vector<2x8xf32>
    %27 = vector.multi_reduction <add>, %26, %cst_14 [2] : vector<2x8x8xf32> to vector<2x8xf32>
    %28 = vector.shape_cast %27 : vector<2x8xf32> to vector<2x8x1xf32>
    %29 = tpu.reciprocal %28 {approx = true} : vector<2x8x1xf32> -> vector<2x8x1xf32>
    %30 = vector.broadcast %29 : vector<2x8x1xf32> to vector<2x8x8xf32>
    %31 = arith.mulf %26, %30 : vector<2x8x8xf32>
    %32 = arith.addf %14, %31 : vector<2x8x8xf32>
    "tpu.trace_start"() <{level = 10 : i32, message = "bqk,bkd->bqd"}> : () -> ()
    %cst_15 = arith.constant dense<0.000000e+00> : vector<2x8x8xf32>
    %33 = tpu.matmul %31, %17, %cst_15 {dimension_numbers = #tpu.dot_dimension_numbers<[2], [1], [1], [2], [0, 0, 0, 1, 1, 2], [0], [0]>} : vector<2x8x8xf32>, vector<2x8x8xf32>, vector<2x8x8xf32> -> vector<2x8x8xf32>
    "tpu.trace_stop"() : () -> ()
    %34 = vector.extract_strided_slice %8 {offsets = [0, 0, 8], sizes = [2, 8, 8], strides = [1, 1, 1]} : vector<2x8x32xf32> to vector<2x8x8xf32>
    %35 = vector.extract_strided_slice %10 {offsets = [0, 0, 8], sizes = [2, 8, 8], strides = [1, 1, 1]} : vector<2x8x32xf32> to vector<2x8x8xf32>
    %36 = vector.extract_strided_slice %12 {offsets = [0, 0, 8], sizes = [2, 8, 8], strides = [1, 1, 1]} : vector<2x8x32xf32> to vector<2x8x8xf32>
    "tpu.trace_start"() <{level = 10 : i32, message = "bqd,bkd->bqk"}> : () -> ()
    %cst_16 = arith.constant dense<0.000000e+00> : vector<2x8x8xf32>
    %37 = tpu.matmul %34, %35, %cst_16 {dimension_numbers = #tpu.dot_dimension_numbers<[2], [2], [1], [1], [0, 0, 0, 1, 1, 1], [0], [0]>} : vector<2x8x8xf32>, vector<2x8x8xf32>, vector<2x8x8xf32> -> vector<2x8x8xf32>
    "tpu.trace_stop"() : () -> ()
    %cst_17 = arith.constant 0.353553385 : f32
    %38 = vector.broadcast %cst_17 : f32 to vector<2x8x8xf32>
    %39 = arith.mulf %37, %38 : vector<2x8x8xf32>
    %40 = arith.addf %39, %13 : vector<2x8x8xf32>
    %cst_18 = arith.constant dense<0xFF800000> : vector<2x8xf32>
    %41 = vector.multi_reduction <maximumf>, %40, %cst_18 [2] : vector<2x8x8xf32> to vector<2x8xf32>
    %42 = vector.shape_cast %41 : vector<2x8xf32> to vector<2x8x1xf32>
    %43 = vector.broadcast %42 : vector<2x8x1xf32> to vector<2x8x8xf32>
    %44 = arith.subf %40, %43 : vector<2x8x8xf32>
    %45 = math.exp %44 : vector<2x8x8xf32>
    %cst_19 = arith.constant dense<0.000000e+00> : vector<2x8xf32>
    %46 = vector.multi_reduction <add>, %45, %cst_19 [2] : vector<2x8x8xf32> to vector<2x8xf32>
    %47 = vector.shape_cast %46 : vector<2x8xf32> to vector<2x8x1xf32>
    %48 = tpu.reciprocal %47 {approx = true} : vector<2x8x1xf32> -> vector<2x8x1xf32>
    %49 = vector.broadcast %48 : vector<2x8x1xf32> to vector<2x8x8xf32>
    %50 = arith.mulf %45, %49 : vector<2x8x8xf32>
    %51 = arith.addf %32, %50 : vector<2x8x8xf32>
    "tpu.trace_start"() <{level = 10 : i32, message = "bqk,bkd->bqd"}> : () -> ()
    %cst_20 = arith.constant dense<0.000000e+00> : vector<2x8x8xf32>
    %52 = tpu.matmul %50, %36, %cst_20 {dimension_numbers = #tpu.dot_dimension_numbers<[2], [1], [1], [2], [0, 0, 0, 1, 1, 2], [0], [0]>} : vector<2x8x8xf32>, vector<2x8x8xf32>, vector<2x8x8xf32> -> vector<2x8x8xf32>
    "tpu.trace_stop"() : () -> ()
    %53 = vector.extract_strided_slice %8 {offsets = [0, 0, 16], sizes = [2, 8, 8], strides = [1, 1, 1]} : vector<2x8x32xf32> to vector<2x8x8xf32>
    %54 = vector.extract_strided_slice %10 {offsets = [0, 0, 16], sizes = [2, 8, 8], strides = [1, 1, 1]} : vector<2x8x32xf32> to vector<2x8x8xf32>
    %55 = vector.extract_strided_slice %12 {offsets = [0, 0, 16], sizes = [2, 8, 8], strides = [1, 1, 1]} : vector<2x8x32xf32> to vector<2x8x8xf32>
    "tpu.trace_start"() <{level = 10 : i32, message = "bqd,bkd->bqk"}> : () -> ()
    %cst_21 = arith.constant dense<0.000000e+00> : vector<2x8x8xf32>
    %56 = tpu.matmul %53, %54, %cst_21 {dimension_numbers = #tpu.dot_dimension_numbers<[2], [2], [1], [1], [0, 0, 0, 1, 1, 1], [0], [0]>} : vector<2x8x8xf32>, vector<2x8x8xf32>, vector<2x8x8xf32> -> vector<2x8x8xf32>
    "tpu.trace_stop"() : () -> ()
    %cst_22 = arith.constant 0.353553385 : f32
    %57 = vector.broadcast %cst_22 : f32 to vector<2x8x8xf32>
    %58 = arith.mulf %56, %57 : vector<2x8x8xf32>
    %59 = arith.addf %58, %13 : vector<2x8x8xf32>
    %cst_23 = arith.constant dense<0xFF800000> : vector<2x8xf32>
    %60 = vector.multi_reduction <maximumf>, %59, %cst_23 [2] : vector<2x8x8xf32> to vector<2x8xf32>
    %61 = vector.shape_cast %60 : vector<2x8xf32> to vector<2x8x1xf32>
    %62 = vector.broadcast %61 : vector<2x8x1xf32> to vector<2x8x8xf32>
    %63 = arith.subf %59, %62 : vector<2x8x8xf32>
    %64 = math.exp %63 : vector<2x8x8xf32>
    %cst_24 = arith.constant dense<0.000000e+00> : vector<2x8xf32>
    %65 = vector.multi_reduction <add>, %64, %cst_24 [2] : vector<2x8x8xf32> to vector<2x8xf32>
    %66 = vector.shape_cast %65 : vector<2x8xf32> to vector<2x8x1xf32>
    %67 = tpu.reciprocal %66 {approx = true} : vector<2x8x1xf32> -> vector<2x8x1xf32>
    %68 = vector.broadcast %67 : vector<2x8x1xf32> to vector<2x8x8xf32>
    %69 = arith.mulf %64, %68 : vector<2x8x8xf32>
    %70 = arith.addf %51, %69 : vector<2x8x8xf32>
    "tpu.trace_start"() <{level = 10 : i32, message = "bqk,bkd->bqd"}> : () -> ()
    %cst_25 = arith.constant dense<0.000000e+00> : vector<2x8x8xf32>
    %71 = tpu.matmul %69, %55, %cst_25 {dimension_numbers = #tpu.dot_dimension_numbers<[2], [1], [1], [2], [0, 0, 0, 1, 1, 2], [0], [0]>} : vector<2x8x8xf32>, vector<2x8x8xf32>, vector<2x8x8xf32> -> vector<2x8x8xf32>
    "tpu.trace_stop"() : () -> ()
    %72 = vector.extract_strided_slice %8 {offsets = [0, 0, 24], sizes = [2, 8, 8], strides = [1, 1, 1]} : vector<2x8x32xf32> to vector<2x8x8xf32>
    %73 = vector.extract_strided_slice %10 {offsets = [0, 0, 24], sizes = [2, 8, 8], strides = [1, 1, 1]} : vector<2x8x32xf32> to vector<2x8x8xf32>
    %74 = vector.extract_strided_slice %12 {offsets = [0, 0, 24], sizes = [2, 8, 8], strides = [1, 1, 1]} : vector<2x8x32xf32> to vector<2x8x8xf32>
    "tpu.trace_start"() <{level = 10 : i32, message = "bqd,bkd->bqk"}> : () -> ()
    %cst_26 = arith.constant dense<0.000000e+00> : vector<2x8x8xf32>
    %75 = tpu.matmul %72, %73, %cst_26 {dimension_numbers = #tpu.dot_dimension_numbers<[2], [2], [1], [1], [0, 0, 0, 1, 1, 1], [0], [0]>} : vector<2x8x8xf32>, vector<2x8x8xf32>, vector<2x8x8xf32> -> vector<2x8x8xf32>
    "tpu.trace_stop"() : () -> ()
    %cst_27 = arith.constant 0.353553385 : f32
    %76 = vector.broadcast %cst_27 : f32 to vector<2x8x8xf32>
    %77 = arith.mulf %75, %76 : vector<2x8x8xf32>
    %78 = arith.addf %77, %13 : vector<2x8x8xf32>
    %cst_28 = arith.constant dense<0xFF800000> : vector<2x8xf32>
    %79 = vector.multi_reduction <maximumf>, %78, %cst_28 [2] : vector<2x8x8xf32> to vector<2x8xf32>
    %80 = vector.shape_cast %79 : vector<2x8xf32> to vector<2x8x1xf32>
    %81 = vector.broadcast %80 : vector<2x8x1xf32> to vector<2x8x8xf32>
    %82 = arith.subf %78, %81 : vector<2x8x8xf32>
    %83 = math.exp %82 : vector<2x8x8xf32>
    %cst_29 = arith.constant dense<0.000000e+00> : vector<2x8xf32>
    %84 = vector.multi_reduction <add>, %83, %cst_29 [2] : vector<2x8x8xf32> to vector<2x8xf32>
    %85 = vector.shape_cast %84 : vector<2x8xf32> to vector<2x8x1xf32>
    %86 = tpu.reciprocal %85 {approx = true} : vector<2x8x1xf32> -> vector<2x8x1xf32>
    %87 = vector.broadcast %86 : vector<2x8x1xf32> to vector<2x8x8xf32>
    %88 = arith.mulf %83, %87 : vector<2x8x8xf32>
    %89 = arith.addf %70, %88 : vector<2x8x8xf32>
    "tpu.trace_start"() <{level = 10 : i32, message = "bqk,bkd->bqd"}> : () -> ()
    %cst_30 = arith.constant dense<0.000000e+00> : vector<2x8x8xf32>
    %90 = tpu.matmul %88, %74, %cst_30 {dimension_numbers = #tpu.dot_dimension_numbers<[2], [1], [1], [2], [0, 0, 0, 1, 1, 2], [0], [0]>} : vector<2x8x8xf32>, vector<2x8x8xf32>, vector<2x8x8xf32> -> vector<2x8x8xf32>
    "tpu.trace_stop"() : () -> ()
    %91 = tpu.concatenate %33, %52, %71, %90 in 2 : vector<2x8x8xf32>, vector<2x8x8xf32>, vector<2x8x8xf32>, vector<2x8x8xf32> -> vector<2x8x32xf32>
    %92 = vector.shape_cast %91 : vector<2x8x32xf32> to vector<16x32xf32>
    %cst_31 = arith.constant 2.500000e-01 : f32
    %93 = vector.broadcast %cst_31 : f32 to vector<2x8x8xf32>
    %94 = arith.mulf %89, %93 : vector<2x8x8xf32>
    %c0_32 = arith.constant 0 : index
    %c0_33 = arith.constant 0 : index
    %95 = vector.load %arg7[%c0_32, %c0_33] : memref<32x32xf32, #tpu.memory_space<vmem>>, vector<32x32xf32>
    %cst_34 = arith.constant dense<0.000000e+00> : vector<16x32xf32>
    %96 = tpu.matmul %92, %95, %cst_34 {dimension_numbers = #tpu.dot_dimension_numbers<[1], [0], [0], [1], [0, 0, 1, 1], [], []>} : vector<16x32xf32>, vector<32x32xf32>, vector<16x32xf32> -> vector<16x32xf32>
    %c0_35 = arith.constant 0 : index
    %c0_36 = arith.constant 0 : index
    %97 = vector.load %arg8[%c0_35, %c0_36] : memref<1x32xf32, #tpu.memory_space<vmem>>, vector<1x32xf32>
    %98 = vector.broadcast %97 : vector<1x32xf32> to vector<16x32xf32>
    %99 = arith.addf %96, %98 : vector<16x32xf32>
    %100 = arith.addf %0, %99 : vector<16x32xf32>
    %c0_37 = arith.constant 0 : index
    %c0_38 = arith.constant 0 : index
    %101 = vector.load %arg19[%c0_37, %c0_38] : memref<1x32xf32, #tpu.memory_space<vmem>>, vector<1x32xf32>
    %102 = vector.broadcast %101 : vector<1x32xf32> to vector<16x32xf32>
    %103 = arith.mulf %100, %102 : vector<16x32xf32>
    %c0_39 = arith.constant 0 : index
    %c0_40 = arith.constant 0 : index
    %104 = vector.load %arg20[%c0_39, %c0_40] : memref<1x32xf32, #tpu.memory_space<vmem>>, vector<1x32xf32>
    %105 = vector.broadcast %104 : vector<1x32xf32> to vector<16x32xf32>
    %106 = arith.addf %103, %105 : vector<16x32xf32>
    %c0_41 = arith.constant 0 : index
    %c0_42 = arith.constant 0 : index
    %107 = vector.load %arg9[%c0_41, %c0_42] : memref<32x32xf32, #tpu.memory_space<vmem>>, vector<32x32xf32>
    %cst_43 = arith.constant dense<0.000000e+00> : vector<16x32xf32>
    %108 = tpu.matmul %106, %107, %cst_43 {dimension_numbers = #tpu.dot_dimension_numbers<[1], [0], [0], [1], [0, 0, 1, 1], [], []>} : vector<16x32xf32>, vector<32x32xf32>, vector<16x32xf32> -> vector<16x32xf32>
    %c0_44 = arith.constant 0 : index
    %c0_45 = arith.constant 0 : index
    %109 = vector.load %arg10[%c0_44, %c0_45] : memref<1x32xf32, #tpu.memory_space<vmem>>, vector<1x32xf32>
    %110 = vector.broadcast %109 : vector<1x32xf32> to vector<16x32xf32>
    %111 = arith.addf %108, %110 : vector<16x32xf32>
    %112 = vector.shape_cast %111 : vector<16x32xf32> to vector<2x8x32xf32>
    %c0_46 = arith.constant 0 : index
    %c0_47 = arith.constant 0 : index
    %113 = vector.load %arg11[%c0_46, %c0_47] : memref<32x64xf32, #tpu.memory_space<vmem>>, vector<32x64xf32>
    %cst_48 = arith.constant dense<0.000000e+00> : vector<32x64xf32>
    %114 = tpu.matmul %1, %113, %cst_48 {dimension_numbers = #tpu.dot_dimension_numbers<[1], [0], [0], [1], [0, 0, 1, 1], [], []>} : vector<32x32xf32>, vector<32x64xf32>, vector<32x64xf32> -> vector<32x64xf32>
    %c0_49 = arith.constant 0 : index
    %c0_50 = arith.constant 0 : index
    %115 = vector.load %arg12[%c0_49, %c0_50] : memref<1x64xf32, #tpu.memory_space<vmem>>, vector<1x64xf32>
    %116 = vector.broadcast %115 : vector<1x64xf32> to vector<32x64xf32>
    %117 = arith.addf %114, %116 : vector<32x64xf32>
    %118 = vector.extract_strided_slice %117 {offsets = [0, 0], sizes = [32, 32], strides = [1, 1]} : vector<32x64xf32> to vector<32x32xf32>
    %119 = vector.shape_cast %118 : vector<32x32xf32> to vector<2x16x32xf32>
    %120 = vector.extract_strided_slice %117 {offsets = [0, 32], sizes = [32, 32], strides = [1, 1]} : vector<32x64xf32> to vector<32x32xf32>
    %121 = vector.shape_cast %120 : vector<32x32xf32> to vector<2x16x32xf32>
    %c0_51 = arith.constant 0 : index
    %c0_52 = arith.constant 0 : index
    %c0_53 = arith.constant 0 : index
    %122 = vector.load %arg4[%c0_51, %c0_52, %c0_53] : memref<2x8x16xf32, #tpu.memory_space<vmem>>, vector<2x8x16xf32>
    %cst_54 = arith.constant 0.000000e+00 : f32
    %123 = vector.broadcast %cst_54 : f32 to vector<2x8x16xf32>
    %124 = vector.extract_strided_slice %112 {offsets = [0, 0, 0], sizes = [2, 8, 8], strides = [1, 1, 1]} : vector<2x8x32xf32> to vector<2x8x8xf32>
    %125 = vector.extract_strided_slice %119 {offsets = [0, 0, 0], sizes = [2, 16, 8], strides = [1, 1, 1]} : vector<2x16x32xf32> to vector<2x16x8xf32>
    %126 = vector.extract_strided_slice %121 {offsets = [0, 0, 0], sizes = [2, 16, 8], strides = [1, 1, 1]} : vector<2x16x32xf32> to vector<2x16x8xf32>
    "tpu.trace_start"() <{level = 10 : i32, message = "bqd,bkd->bqk"}> : () -> ()
    %cst_55 = arith.constant dense<0.000000e+00> : vector<2x8x16xf32>
    %127 = tpu.matmul %124, %125, %cst_55 {dimension_numbers = #tpu.dot_dimension_numbers<[2], [2], [1], [1], [0, 0, 0, 1, 1, 1], [0], [0]>} : vector<2x8x8xf32>, vector<2x16x8xf32>, vector<2x8x16xf32> -> vector<2x8x16xf32>
    "tpu.trace_stop"() : () -> ()
    %cst_56 = arith.constant 0.353553385 : f32
    %128 = vector.broadcast %cst_56 : f32 to vector<2x8x16xf32>
    %129 = arith.mulf %127, %128 : vector<2x8x16xf32>
    %130 = arith.addf %129, %122 : vector<2x8x16xf32>
    %cst_57 = arith.constant dense<0xFF800000> : vector<2x8xf32>
    %131 = vector.multi_reduction <maximumf>, %130, %cst_57 [2] : vector<2x8x16xf32> to vector<2x8xf32>
    %132 = vector.shape_cast %131 : vector<2x8xf32> to vector<2x8x1xf32>
    %133 = vector.broadcast %132 : vector<2x8x1xf32> to vector<2x8x16xf32>
    %134 = arith.subf %130, %133 : vector<2x8x16xf32>
    %135 = math.exp %134 : vector<2x8x16xf32>
    %cst_58 = arith.constant dense<0.000000e+00> : vector<2x8xf32>
    %136 = vector.multi_reduction <add>, %135, %cst_58 [2] : vector<2x8x16xf32> to vector<2x8xf32>
    %137 = vector.shape_cast %136 : vector<2x8xf32> to vector<2x8x1xf32>
    %138 = tpu.reciprocal %137 {approx = true} : vector<2x8x1xf32> -> vector<2x8x1xf32>
    %139 = vector.broadcast %138 : vector<2x8x1xf32> to vector<2x8x16xf32>
    %140 = arith.mulf %135, %139 : vector<2x8x16xf32>
    %141 = arith.addf %123, %140 : vector<2x8x16xf32>
    "tpu.trace_start"() <{level = 10 : i32, message = "bqk,bkd->bqd"}> : () -> ()
    %cst_59 = arith.constant dense<0.000000e+00> : vector<2x8x8xf32>
    %142 = tpu.matmul %140, %126, %cst_59 {dimension_numbers = #tpu.dot_dimension_numbers<[2], [1], [1], [2], [0, 0, 0, 1, 1, 2], [0], [0]>} : vector<2x8x16xf32>, vector<2x16x8xf32>, vector<2x8x8xf32> -> vector<2x8x8xf32>
    "tpu.trace_stop"() : () -> ()
    %143 = vector.extract_strided_slice %112 {offsets = [0, 0, 8], sizes = [2, 8, 8], strides = [1, 1, 1]} : vector<2x8x32xf32> to vector<2x8x8xf32>
    %144 = vector.extract_strided_slice %119 {offsets = [0, 0, 8], sizes = [2, 16, 8], strides = [1, 1, 1]} : vector<2x16x32xf32> to vector<2x16x8xf32>
    %145 = vector.extract_strided_slice %121 {offsets = [0, 0, 8], sizes = [2, 16, 8], strides = [1, 1, 1]} : vector<2x16x32xf32> to vector<2x16x8xf32>
    "tpu.trace_start"() <{level = 10 : i32, message = "bqd,bkd->bqk"}> : () -> ()
    %cst_60 = arith.constant dense<0.000000e+00> : vector<2x8x16xf32>
    %146 = tpu.matmul %143, %144, %cst_60 {dimension_numbers = #tpu.dot_dimension_numbers<[2], [2], [1], [1], [0, 0, 0, 1, 1, 1], [0], [0]>} : vector<2x8x8xf32>, vector<2x16x8xf32>, vector<2x8x16xf32> -> vector<2x8x16xf32>
    "tpu.trace_stop"() : () -> ()
    %cst_61 = arith.constant 0.353553385 : f32
    %147 = vector.broadcast %cst_61 : f32 to vector<2x8x16xf32>
    %148 = arith.mulf %146, %147 : vector<2x8x16xf32>
    %149 = arith.addf %148, %122 : vector<2x8x16xf32>
    %cst_62 = arith.constant dense<0xFF800000> : vector<2x8xf32>
    %150 = vector.multi_reduction <maximumf>, %149, %cst_62 [2] : vector<2x8x16xf32> to vector<2x8xf32>
    %151 = vector.shape_cast %150 : vector<2x8xf32> to vector<2x8x1xf32>
    %152 = vector.broadcast %151 : vector<2x8x1xf32> to vector<2x8x16xf32>
    %153 = arith.subf %149, %152 : vector<2x8x16xf32>
    %154 = math.exp %153 : vector<2x8x16xf32>
    %cst_63 = arith.constant dense<0.000000e+00> : vector<2x8xf32>
    %155 = vector.multi_reduction <add>, %154, %cst_63 [2] : vector<2x8x16xf32> to vector<2x8xf32>
    %156 = vector.shape_cast %155 : vector<2x8xf32> to vector<2x8x1xf32>
    %157 = tpu.reciprocal %156 {approx = true} : vector<2x8x1xf32> -> vector<2x8x1xf32>
    %158 = vector.broadcast %157 : vector<2x8x1xf32> to vector<2x8x16xf32>
    %159 = arith.mulf %154, %158 : vector<2x8x16xf32>
    %160 = arith.addf %141, %159 : vector<2x8x16xf32>
    "tpu.trace_start"() <{level = 10 : i32, message = "bqk,bkd->bqd"}> : () -> ()
    %cst_64 = arith.constant dense<0.000000e+00> : vector<2x8x8xf32>
    %161 = tpu.matmul %159, %145, %cst_64 {dimension_numbers = #tpu.dot_dimension_numbers<[2], [1], [1], [2], [0, 0, 0, 1, 1, 2], [0], [0]>} : vector<2x8x16xf32>, vector<2x16x8xf32>, vector<2x8x8xf32> -> vector<2x8x8xf32>
    "tpu.trace_stop"() : () -> ()
    %162 = vector.extract_strided_slice %112 {offsets = [0, 0, 16], sizes = [2, 8, 8], strides = [1, 1, 1]} : vector<2x8x32xf32> to vector<2x8x8xf32>
    %163 = vector.extract_strided_slice %119 {offsets = [0, 0, 16], sizes = [2, 16, 8], strides = [1, 1, 1]} : vector<2x16x32xf32> to vector<2x16x8xf32>
    %164 = vector.extract_strided_slice %121 {offsets = [0, 0, 16], sizes = [2, 16, 8], strides = [1, 1, 1]} : vector<2x16x32xf32> to vector<2x16x8xf32>
    "tpu.trace_start"() <{level = 10 : i32, message = "bqd,bkd->bqk"}> : () -> ()
    %cst_65 = arith.constant dense<0.000000e+00> : vector<2x8x16xf32>
    %165 = tpu.matmul %162, %163, %cst_65 {dimension_numbers = #tpu.dot_dimension_numbers<[2], [2], [1], [1], [0, 0, 0, 1, 1, 1], [0], [0]>} : vector<2x8x8xf32>, vector<2x16x8xf32>, vector<2x8x16xf32> -> vector<2x8x16xf32>
    "tpu.trace_stop"() : () -> ()
    %cst_66 = arith.constant 0.353553385 : f32
    %166 = vector.broadcast %cst_66 : f32 to vector<2x8x16xf32>
    %167 = arith.mulf %165, %166 : vector<2x8x16xf32>
    %168 = arith.addf %167, %122 : vector<2x8x16xf32>
    %cst_67 = arith.constant dense<0xFF800000> : vector<2x8xf32>
    %169 = vector.multi_reduction <maximumf>, %168, %cst_67 [2] : vector<2x8x16xf32> to vector<2x8xf32>
    %170 = vector.shape_cast %169 : vector<2x8xf32> to vector<2x8x1xf32>
    %171 = vector.broadcast %170 : vector<2x8x1xf32> to vector<2x8x16xf32>
    %172 = arith.subf %168, %171 : vector<2x8x16xf32>
    %173 = math.exp %172 : vector<2x8x16xf32>
    %cst_68 = arith.constant dense<0.000000e+00> : vector<2x8xf32>
    %174 = vector.multi_reduction <add>, %173, %cst_68 [2] : vector<2x8x16xf32> to vector<2x8xf32>
    %175 = vector.shape_cast %174 : vector<2x8xf32> to vector<2x8x1xf32>
    %176 = tpu.reciprocal %175 {approx = true} : vector<2x8x1xf32> -> vector<2x8x1xf32>
    %177 = vector.broadcast %176 : vector<2x8x1xf32> to vector<2x8x16xf32>
    %178 = arith.mulf %173, %177 : vector<2x8x16xf32>
    %179 = arith.addf %160, %178 : vector<2x8x16xf32>
    "tpu.trace_start"() <{level = 10 : i32, message = "bqk,bkd->bqd"}> : () -> ()
    %cst_69 = arith.constant dense<0.000000e+00> : vector<2x8x8xf32>
    %180 = tpu.matmul %178, %164, %cst_69 {dimension_numbers = #tpu.dot_dimension_numbers<[2], [1], [1], [2], [0, 0, 0, 1, 1, 2], [0], [0]>} : vector<2x8x16xf32>, vector<2x16x8xf32>, vector<2x8x8xf32> -> vector<2x8x8xf32>
    "tpu.trace_stop"() : () -> ()
    %181 = vector.extract_strided_slice %112 {offsets = [0, 0, 24], sizes = [2, 8, 8], strides = [1, 1, 1]} : vector<2x8x32xf32> to vector<2x8x8xf32>
    %182 = vector.extract_strided_slice %119 {offsets = [0, 0, 24], sizes = [2, 16, 8], strides = [1, 1, 1]} : vector<2x16x32xf32> to vector<2x16x8xf32>
    %183 = vector.extract_strided_slice %121 {offsets = [0, 0, 24], sizes = [2, 16, 8], strides = [1, 1, 1]} : vector<2x16x32xf32> to vector<2x16x8xf32>
    "tpu.trace_start"() <{level = 10 : i32, message = "bqd,bkd->bqk"}> : () -> ()
    %cst_70 = arith.constant dense<0.000000e+00> : vector<2x8x16xf32>
    %184 = tpu.matmul %181, %182, %cst_70 {dimension_numbers = #tpu.dot_dimension_numbers<[2], [2], [1], [1], [0, 0, 0, 1, 1, 1], [0], [0]>} : vector<2x8x8xf32>, vector<2x16x8xf32>, vector<2x8x16xf32> -> vector<2x8x16xf32>
    "tpu.trace_stop"() : () -> ()
    %cst_71 = arith.constant 0.353553385 : f32
    %185 = vector.broadcast %cst_71 : f32 to vector<2x8x16xf32>
    %186 = arith.mulf %184, %185 : vector<2x8x16xf32>
    %187 = arith.addf %186, %122 : vector<2x8x16xf32>
    %cst_72 = arith.constant dense<0xFF800000> : vector<2x8xf32>
    %188 = vector.multi_reduction <maximumf>, %187, %cst_72 [2] : vector<2x8x16xf32> to vector<2x8xf32>
    %189 = vector.shape_cast %188 : vector<2x8xf32> to vector<2x8x1xf32>
    %190 = vector.broadcast %189 : vector<2x8x1xf32> to vector<2x8x16xf32>
    %191 = arith.subf %187, %190 : vector<2x8x16xf32>
    %192 = math.exp %191 : vector<2x8x16xf32>
    %cst_73 = arith.constant dense<0.000000e+00> : vector<2x8xf32>
    %193 = vector.multi_reduction <add>, %192, %cst_73 [2] : vector<2x8x16xf32> to vector<2x8xf32>
    %194 = vector.shape_cast %193 : vector<2x8xf32> to vector<2x8x1xf32>
    %195 = tpu.reciprocal %194 {approx = true} : vector<2x8x1xf32> -> vector<2x8x1xf32>
    %196 = vector.broadcast %195 : vector<2x8x1xf32> to vector<2x8x16xf32>
    %197 = arith.mulf %192, %196 : vector<2x8x16xf32>
    %198 = arith.addf %179, %197 : vector<2x8x16xf32>
    "tpu.trace_start"() <{level = 10 : i32, message = "bqk,bkd->bqd"}> : () -> ()
    %cst_74 = arith.constant dense<0.000000e+00> : vector<2x8x8xf32>
    %199 = tpu.matmul %197, %183, %cst_74 {dimension_numbers = #tpu.dot_dimension_numbers<[2], [1], [1], [2], [0, 0, 0, 1, 1, 2], [0], [0]>} : vector<2x8x16xf32>, vector<2x16x8xf32>, vector<2x8x8xf32> -> vector<2x8x8xf32>
    "tpu.trace_stop"() : () -> ()
    %200 = tpu.concatenate %142, %161, %180, %199 in 2 : vector<2x8x8xf32>, vector<2x8x8xf32>, vector<2x8x8xf32>, vector<2x8x8xf32> -> vector<2x8x32xf32>
    %201 = vector.shape_cast %200 : vector<2x8x32xf32> to vector<16x32xf32>
    %cst_75 = arith.constant 2.500000e-01 : f32
    %202 = vector.broadcast %cst_75 : f32 to vector<2x8x16xf32>
    %203 = arith.mulf %198, %202 : vector<2x8x16xf32>
    %c0_76 = arith.constant 0 : index
    %c0_77 = arith.constant 0 : index
    %204 = vector.load %arg13[%c0_76, %c0_77] : memref<32x32xf32, #tpu.memory_space<vmem>>, vector<32x32xf32>
    %cst_78 = arith.constant dense<0.000000e+00> : vector<16x32xf32>
    %205 = tpu.matmul %201, %204, %cst_78 {dimension_numbers = #tpu.dot_dimension_numbers<[1], [0], [0], [1], [0, 0, 1, 1], [], []>} : vector<16x32xf32>, vector<32x32xf32>, vector<16x32xf32> -> vector<16x32xf32>
    %c0_79 = arith.constant 0 : index
    %c0_80 = arith.constant 0 : index
    %206 = vector.load %arg14[%c0_79, %c0_80] : memref<1x32xf32, #tpu.memory_space<vmem>>, vector<1x32xf32>
    %207 = vector.broadcast %206 : vector<1x32xf32> to vector<16x32xf32>
    %208 = arith.addf %205, %207 : vector<16x32xf32>
    %209 = arith.addf %106, %208 : vector<16x32xf32>
    %c0_81 = arith.constant 0 : index
    %c0_82 = arith.constant 0 : index
    %210 = vector.load %arg21[%c0_81, %c0_82] : memref<1x32xf32, #tpu.memory_space<vmem>>, vector<1x32xf32>
    %211 = vector.broadcast %210 : vector<1x32xf32> to vector<16x32xf32>
    %212 = arith.mulf %209, %211 : vector<16x32xf32>
    %c0_83 = arith.constant 0 : index
    %c0_84 = arith.constant 0 : index
    %213 = vector.load %arg22[%c0_83, %c0_84] : memref<1x32xf32, #tpu.memory_space<vmem>>, vector<1x32xf32>
    %214 = vector.broadcast %213 : vector<1x32xf32> to vector<16x32xf32>
    %215 = arith.addf %212, %214 : vector<16x32xf32>
    %c0_85 = arith.constant 0 : index
    %c0_86 = arith.constant 0 : index
    %216 = vector.load %arg15[%c0_85, %c0_86] : memref<32x64xf32, #tpu.memory_space<vmem>>, vector<32x64xf32>
    %cst_87 = arith.constant dense<0.000000e+00> : vector<16x64xf32>
    %217 = tpu.matmul %215, %216, %cst_87 {dimension_numbers = #tpu.dot_dimension_numbers<[1], [0], [0], [1], [0, 0, 1, 1], [], []>} : vector<16x32xf32>, vector<32x64xf32>, vector<16x64xf32> -> vector<16x64xf32>
    %c0_88 = arith.constant 0 : index
    %c0_89 = arith.constant 0 : index
    %218 = vector.load %arg16[%c0_88, %c0_89] : memref<1x64xf32, #tpu.memory_space<vmem>>, vector<1x64xf32>
    %219 = vector.broadcast %218 : vector<1x64xf32> to vector<16x64xf32>
    %220 = arith.addf %217, %219 : vector<16x64xf32>
    %cst_90 = arith.constant 0.000000e+00 : f32
    %221 = vector.broadcast %cst_90 : f32 to vector<16x64xf32>
    %222 = arith.maximumf %220, %221 : vector<16x64xf32>
    %c0_91 = arith.constant 0 : index
    %c0_92 = arith.constant 0 : index
    %223 = vector.load %arg17[%c0_91, %c0_92] : memref<64x32xf32, #tpu.memory_space<vmem>>, vector<64x32xf32>
    %cst_93 = arith.constant dense<0.000000e+00> : vector<16x32xf32>
    %224 = tpu.matmul %222, %223, %cst_93 {dimension_numbers = #tpu.dot_dimension_numbers<[1], [0], [0], [1], [0, 0, 1, 1], [], []>} : vector<16x64xf32>, vector<64x32xf32>, vector<16x32xf32> -> vector<16x32xf32>
    %c0_94 = arith.constant 0 : index
    %c0_95 = arith.constant 0 : index
    %225 = vector.load %arg18[%c0_94, %c0_95] : memref<1x32xf32, #tpu.memory_space<vmem>>, vector<1x32xf32>
    %226 = vector.broadcast %225 : vector<1x32xf32> to vector<16x32xf32>
    %227 = arith.addf %224, %226 : vector<16x32xf32>
    %cst_96 = arith.constant 0.000000e+00 : f32
    %228 = vector.broadcast %cst_96 : f32 to vector<16x32xf32>
    %229 = arith.maximumf %227, %228 : vector<16x32xf32>
    %230 = arith.addf %215, %229 : vector<16x32xf32>
    %c0_97 = arith.constant 0 : index
    %c0_98 = arith.constant 0 : index
    %231 = vector.load %arg23[%c0_97, %c0_98] : memref<1x32xf32, #tpu.memory_space<vmem>>, vector<1x32xf32>
    %232 = vector.broadcast %231 : vector<1x32xf32> to vector<16x32xf32>
    %233 = arith.mulf %230, %232 : vector<16x32xf32>
    %c0_99 = arith.constant 0 : index
    %c0_100 = arith.constant 0 : index
    %234 = vector.load %arg24[%c0_99, %c0_100] : memref<1x32xf32, #tpu.memory_space<vmem>>, vector<1x32xf32>
    %235 = vector.broadcast %234 : vector<1x32xf32> to vector<16x32xf32>
    %236 = arith.addf %233, %235 : vector<16x32xf32>
    %c0_101 = arith.constant 0 : index
    %c0_102 = arith.constant 0 : index
    %237 = vector.load %arg25[%c0_101, %c0_102] : memref<16x32xf32, #tpu.memory_space<vmem>>, vector<16x32xf32>
    tpu.vector_store %arg25[%c0_101, %c0_102], %236 {strides = array<i32>} : memref<16x32xf32, #tpu.memory_space<vmem>>, vector<16x32xf32>,
    %c0_103 = arith.constant 0 : index
    %c0_104 = arith.constant 0 : index
    %c0_105 = arith.constant 0 : index
    %238 = vector.load %arg26[%c0_103, %c0_104, %c0_105] : memref<2x8x8xf32, #tpu.memory_space<vmem>>, vector<2x8x8xf32>
    tpu.vector_store %arg26[%c0_103, %c0_104, %c0_105], %94 {strides = array<i32>} : memref<2x8x8xf32, #tpu.memory_space<vmem>>, vector<2x8x8xf32>,
    %c0_106 = arith.constant 0 : index
    %c0_107 = arith.constant 0 : index
    %c0_108 = arith.constant 0 : index
    %239 = vector.load %arg27[%c0_106, %c0_107, %c0_108] : memref<2x8x16xf32, #tpu.memory_space<vmem>>, vector<2x8x16xf32>
    tpu.vector_store %arg27[%c0_106, %c0_107, %c0_108], %203 {strides = array<i32>} : memref<2x8x16xf32, #tpu.memory_space<vmem>>, vector<2x8x16xf32>,
    return
  }
  func.func @transform_0(%arg0: i32) -> (i32, i32) {
    %c0_i32 = arith.constant 0 : i32
    %c0_i32_0 = arith.constant 0 : i32
    %c0_i32_1 = arith.constant 0 : i32
    return %c0_i32, %c0_i32_0 : i32, i32
  }
  func.func @transform_1(%arg0: i32) -> (i32, i32) {
    %c0_i32 = arith.constant 0 : i32
    %c0_i32_0 = arith.constant 0 : i32
    %c0_i32_1 = arith.constant 0 : i32
    return %c0_i32, %c0_i32_0 : i32, i32
  }
  func.func @transform_2(%arg0: i32) -> (i32, i32, i32) {
    %c0_i32 = arith.constant 0 : i32
    %c0_i32_0 = arith.constant 0 : i32
    %c0_i32_1 = arith.constant 0 : i32
    %c0_i32_2 = arith.constant 0 : i32
    return %c0_i32, %c0_i32_0, %c0_i32_1 : i32, i32, i32
  }
  func.func @transform_3(%arg0: i32) -> (i32, i32, i32) {
    %c0_i32 = arith.constant 0 : i32
    %c0_i32_0 = arith.constant 0 : i32
    %c0_i32_1 = arith.constant 0 : i32
    %c0_i32_2 = arith.constant 0 : i32
    return %c0_i32, %c0_i32_0, %c0_i32_1 : i32, i32, i32
  }
  func.func @transform_4(%arg0: i32) -> (i32, i32) {
    %c0_i32 = arith.constant 0 : i32
    %c0_i32_0 = arith.constant 0 : i32
    %c0_i32_1 = arith.constant 0 : i32
    return %c0_i32, %c0_i32_0 : i32, i32
  }
  func.func @transform_5(%arg0: i32) -> (i32, i32) {
    %c0_i32 = arith.constant 0 : i32
    %c0_i32_0 = arith.constant 0 : i32
    %c0_i32_1 = arith.constant 0 : i32
    return %c0_i32, %c0_i32_0 : i32, i32
  }
  func.func @transform_6(%arg0: i32) -> (i32, i32) {
    %c0_i32 = arith.constant 0 : i32
    %c0_i32_0 = arith.constant 0 : i32
    %c0_i32_1 = arith.constant 0 : i32
    return %c0_i32, %c0_i32_0 : i32, i32
  }
  func.func @transform_7(%arg0: i32) -> (i32, i32) {
    %c0_i32 = arith.constant 0 : i32
    %c0_i32_0 = arith.constant 0 : i32
    %c0_i32_1 = arith.constant 0 : i32
    return %c0_i32, %c0_i32_0 : i32, i32
  }
  func.func @transform_8(%arg0: i32) -> (i32, i32) {
    %c0_i32 = arith.constant 0 : i32
    %c0_i32_0 = arith.constant 0 : i32
    %c0_i32_1 = arith.constant 0 : i32
    return %c0_i32, %c0_i32_0 : i32, i32
  }
  func.func @transform_9(%arg0: i32) -> (i32, i32) {
    %c0_i32 = arith.constant 0 : i32
    %c0_i32_0 = arith.constant 0 : i32
    %c0_i32_1 = arith.constant 0 : i32
    return %c0_i32, %c0_i32_0 : i32, i32
  }
  func.func @transform_10(%arg0: i32) -> (i32, i32) {
    %c0_i32 = arith.constant 0 : i32
    %c0_i32_0 = arith.constant 0 : i32
    %c0_i32_1 = arith.constant 0 : i32
    return %c0_i32, %c0_i32_0 : i32, i32
  }
  func.func @transform_11(%arg0: i32) -> (i32, i32) {
    %c0_i32 = arith.constant 0 : i32
    %c0_i32_0 = arith.constant 0 : i32
    %c0_i32_1 = arith.constant 0 : i32
    return %c0_i32, %c0_i32_0 : i32, i32
  }
  func.func @transform_12(%arg0: i32) -> (i32, i32) {
    %c0_i32 = arith.constant 0 : i32
    %c0_i32_0 = arith.constant 0 : i32
    %c0_i32_1 = arith.constant 0 : i32
    return %c0_i32, %c0_i32_0 : i32, i32
  }
  func.func @transform_13(%arg0: i32) -> (i32, i32) {
    %c0_i32 = arith.constant 0 : i32
    %c0_i32_0 = arith.constant 0 : i32
    %c0_i32_1 = arith.constant 0 : i32
    return %c0_i32, %c0_i32_0 : i32, i32
  }
  func.func @transform_14(%arg0: i32) -> (i32, i32) {
    %c0_i32 = arith.constant 0 : i32
    %c0_i32_0 = arith.constant 0 : i32
    %c0_i32_1 = arith.constant 0 : i32
    return %c0_i32, %c0_i32_0 : i32, i32
  }
  func.func @transform_15(%arg0: i32) -> (i32, i32) {
    %c0_i32 = arith.constant 0 : i32
    %c0_i32_0 = arith.constant 0 : i32
    %c0_i32_1 = arith.constant 0 : i32
    return %c0_i32, %c0_i32_0 : i32, i32
  }
  func.func @transform_16(%arg0: i32) -> (i32, i32) {
    %c0_i32 = arith.constant 0 : i32
    %c0_i32_0 = arith.constant 0 : i32
    %c0_i32_1 = arith.constant 0 : i32
    return %c0_i32, %c0_i32_0 : i32, i32
  }
  func.func @transform_17(%arg0: i32) -> (i32, i32) {
    %c0_i32 = arith.constant 0 : i32
    %c0_i32_0 = arith.constant 0 : i32
    %c0_i32_1 = arith.constant 0 : i32
    return %c0_i32, %c0_i32_0 : i32, i32
  }
  func.func @transform_18(%arg0: i32) -> (i32, i32) {
    %c0_i32 = arith.constant 0 : i32
    %c0_i32_0 = arith.constant 0 : i32
    %c0_i32_1 = arith.constant 0 : i32
    return %c0_i32, %c0_i32_0 : i32, i32
  }
  func.func @transform_19(%arg0: i32) -> (i32, i32) {
    %c0_i32 = arith.constant 0 : i32
    %c0_i32_0 = arith.constant 0 : i32
    %c0_i32_1 = arith.constant 0 : i32
    return %c0_i32, %c0_i32_0 : i32, i32
  }
  func.func @transform_20(%arg0: i32) -> (i32, i32) {
    %c0_i32 = arith.constant 0 : i32
    %c0_i32_0 = arith.constant 0 : i32
    %c0_i32_1 = arith.constant 0 : i32
    return %c0_i32, %c0_i32_0 : i32, i32
  }
  func.func @transform_21(%arg0: i32) -> (i32, i32) {
    %c0_i32 = arith.constant 0 : i32
    %c0_i32_0 = arith.constant 0 : i32
    %c0_i32_1 = arith.constant 0 : i32
    return %c0_i32, %c0_i32_0 : i32, i32
  }
  func.func @transform_22(%arg0: i32) -> (i32, i32) {
    %c0_i32 = arith.constant 0 : i32
    %c0_i32_0 = arith.constant 0 : i32
    %c0_i32_1 = arith.constant 0 : i32
    return %c0_i32, %c0_i32_0 : i32, i32
  }
  func.func @transform_23(%arg0: i32) -> (i32, i32) {
    %c0_i32 = arith.constant 0 : i32
    %c0_i32_0 = arith.constant 0 : i32
    %c0_i32_1 = arith.constant 0 : i32
    return %c0_i32, %c0_i32_0 : i32, i32
  }
  func.func @transform_24(%arg0: i32) -> (i32, i32) {
    %c0_i32 = arith.constant 0 : i32
    %c0_i32_0 = arith.constant 0 : i32
    %c0_i32_1 = arith.constant 0 : i32
    return %c0_i32, %c0_i32_0 : i32, i32
  }
  func.func @transform_25(%arg0: i32) -> (i32, i32, i32) {
    %c0_i32 = arith.constant 0 : i32
    %c0_i32_0 = arith.constant 0 : i32
    %c0_i32_1 = arith.constant 0 : i32
    %c0_i32_2 = arith.constant 0 : i32
    return %c0_i32, %c0_i32_0, %c0_i32_1 : i32, i32, i32
  }
  func.func @transform_26(%arg0: i32) -> (i32, i32, i32) {
    %c0_i32 = arith.constant 0 : i32
    %c0_i32_0 = arith.constant 0 : i32
    %c0_i32_1 = arith.constant 0 : i32
    %c0_i32_2 = arith.constant 0 : i32
    return %c0_i32, %c0_i32_0, %c0_i32_1 : i32, i32, i32
  }
}

</mosaic_0001>

<llo_original>
// kernel: tpu_custom_call.1
$region0: #{tpu_custom_call.1}
  #allocation0 [shape = 'u32[]', space=smem, size = 0x4, offset = 0x4, fixed_abs, tag = 'smem constant byte address 0x4 - core index']
  #allocation1 [shape = 'u32[72,128]{1,0:T(1,128)}', space=vmem, size = 0x9000, scoped, tag = 'internal scratch']
  %s0 = inlined_call_operand.hbm [shape: f32[16,32], index: 0, kind: input, shape index: {}]
  %s1 = inlined_call_operand.vmem [shape: f32[32,32], index: 1, kind: input, shape index: {}]
  %s2 = inlined_call_operand.hbm [shape: f32[2,8,8], index: 2, kind: input, shape index: {}]
  %s3 = inlined_call_operand.hbm [shape: f32[2,8,16], index: 3, kind: input, shape index: {}]
  %s4 = inlined_call_operand.vmem [shape: f32[32,96], index: 4, kind: input, shape index: {}]
  %s5 = inlined_call_operand.vmem [shape: f32[1,96], index: 5, kind: input, shape index: {}]
  %s6 = inlined_call_operand.vmem [shape: f32[32,32], index: 6, kind: input, shape index: {}]
  %s7 = inlined_call_operand.vmem [shape: f32[1,32], index: 7, kind: input, shape index: {}]
  %s8 = inlined_call_operand.hbm [shape: f32[32,32], index: 8, kind: input, shape index: {}]
  %s9 = inlined_call_operand.vmem [shape: f32[1,32], index: 9, kind: input, shape index: {}]
  %s10 = inlined_call_operand.hbm [shape: f32[32,64], index: 10, kind: input, shape index: {}]
  %s11 = inlined_call_operand.vmem [shape: f32[1,64], index: 11, kind: input, shape index: {}]
  %s12 = inlined_call_operand.hbm [shape: f32[32,32], index: 12, kind: input, shape index: {}]
  %s13 = inlined_call_operand.vmem [shape: f32[1,32], index: 13, kind: input, shape index: {}]
  %s14 = inlined_call_operand.hbm [shape: f32[32,64], index: 14, kind: input, shape index: {}]
  %s15 = inlined_call_operand.vmem [shape: f32[1,64], index: 15, kind: input, shape index: {}]
  %s16 = inlined_call_operand.vmem [shape: f32[64,32], index: 16, kind: input, shape index: {}]
  %s17 = inlined_call_operand.vmem [shape: f32[1,32], index: 17, kind: input, shape index: {}]
  %s18 = inlined_call_operand.vmem [shape: f32[1,32], index: 18, kind: input, shape index: {}]
  %s19 = inlined_call_operand.vmem [shape: f32[1,32], index: 19, kind: input, shape index: {}]
  %s20 = inlined_call_operand.vmem [shape: f32[1,32], index: 20, kind: input, shape index: {}]
  %s21 = inlined_call_operand.vmem [shape: f32[1,32], index: 21, kind: input, shape index: {}]
  %s22 = inlined_call_operand.vmem [shape: f32[1,32], index: 22, kind: input, shape index: {}]
  %s23 = inlined_call_operand.vmem [shape: f32[1,32], index: 23, kind: input, shape index: {}]
  %s24 = inlined_call_operand.hbm [shape: f32[16,32], index: 24, kind: output, shape index: {0}]
  %s25 = inlined_call_operand.hbm [shape: f32[2,8,8], index: 25, kind: output, shape index: {1}]
  %s26 = inlined_call_operand.hbm [shape: f32[2,8,16], index: 26, kind: output, shape index: {2}]
  %27 = xla_tuple %s24, %s25, %s26
  %s28 = sld [smem:[#allocation0]]
  $region150: #{tpu_custom_call.1} parent=0
    _
  %s30 = ssub.s32 1, %s28
  %s31 = scalar_select 0, %s30, %s28
  $region1: #{tpu_custom_call.1} parent=0
    #allocation2 [shape = 'u8[8192]{0}', space=vmem, size = 0x2000, scoped, tag = 'input window, operand 0, single buffered']
    #allocation3 [shape = 's32[1]{0}', space=sflag, size = 0x4, scoped, tag = 'scoped memory for tpu_custom_call.1']
    #allocation4 [shape = 's32[1]{0}', space=sflag, size = 0x4, scoped, tag = 'scoped memory for tpu_custom_call.1']
    #allocation5 [shape = 'u8[8192]{0}', space=vmem, size = 0x2000, scoped, tag = 'input window, operand 2, single buffered']
    #allocation6 [shape = 's32[1]{0}', space=sflag, size = 0x4, scoped, tag = 'scoped memory for tpu_custom_call.1']
    #allocation7 [shape = 'u8[8192]{0}', space=vmem, size = 0x2000, scoped, tag = 'input window, operand 3, single buffered']
    #allocation8 [shape = 'u8[16384]{0}', space=vmem, size = 0x4000, scoped, tag = 'input window, operand 8, single buffered']
    #allocation9 [shape = 's32[1]{0}', space=sflag, size = 0x4, scoped, tag = 'scoped memory for tpu_custom_call.1']
    #allocation10 [shape = 'u8[16384]{0}', space=vmem, size = 0x4000, scoped, tag = 'input window, operand 10, single buffered']
    #allocation11 [shape = 'u8[16384]{0}', space=vmem, size = 0x4000, scoped, tag = 'input window, operand 12, single buffered']
    #allocation12 [shape = 's32[1]{0}', space=sflag, size = 0x4, scoped, tag = 'scoped memory for tpu_custom_call.1']
    #allocation13 [shape = 'u8[16384]{0}', space=vmem, size = 0x4000, scoped, tag = 'input window, operand 14, single buffered']
    #allocation14 [shape = 'u8[8192]{0}', space=vmem, size = 0x2000, scoped, tag = 'output window, operand 0, single buffered']
    #allocation15 [shape = 'u8[8192]{0}', space=vmem, size = 0x2000, scoped, tag = 'output window, operand 1, single buffered']
    #allocation16 [shape = 's32[1]{0}', space=sflag, size = 0x4, scoped, tag = 'scoped memory for tpu_custom_call.1']
    #allocation17 [shape = 'u8[8192]{0}', space=vmem, size = 0x2000, scoped, tag = 'output window, operand 2, single buffered']
    %32 = vsyncpa [#allocation3], 0
    %33 = vsyncpa [#allocation6], 0
    %34 = vsyncpa [#allocation9], 0
    %35 = vsyncpa [#allocation12], 0
    %36 = vsyncpa [#allocation4], 0
    %37 = vsyncpa [#allocation16], 0
    // Predicated region
    $region2: #{tpu_custom_call.1} parent=1 // pred_check
      _
    $region3: #{tpu_custom_call.1} parent=1 // pred_check_branch
      %39 = sbr.rel (0) target = $region5
    $region4: #{tpu_custom_call.1} parent=1 // pred_region
      %41 = vsyncadd [#allocation3], 0
      %s42 = sshll.u32 %s0, 4
      %s43 = int_to_ptr.hbm [resolvable:$true] %s42
      %s44 = sshll.u32 [#allocation2], 4
      %s45 = int_to_ptr.vmem [resolvable:$true] %s44
      %50 = dma.hbm_to_vmem [thread:$0]  %s43, 256, %s45, [#allocation3], 128, 128, 8
    $region5: #{tpu_custom_call.1} parent=1 // pred_fallthru
      _
    // Predicated region
    $region6: #{tpu_custom_call.1} parent=1 // pred_check
      _
    $region7: #{tpu_custom_call.1} parent=1 // pred_check_branch
      %52 = sbr.rel (0) target = $region9
    $region8: #{tpu_custom_call.1} parent=1 // pred_region
      _
    $region9: #{tpu_custom_call.1} parent=1 // pred_fallthru
      _
    // Predicated region
    $region10: #{tpu_custom_call.1} parent=1 // pred_check
      _
    $region11: #{tpu_custom_call.1} parent=1 // pred_check_branch
      %54 = sbr.rel (0) target = $region13
    $region12: #{tpu_custom_call.1} parent=1 // pred_region
      %56 = vsyncadd [#allocation6], 0
      %s57 = sshll.u32 %s2, 4
      %s58 = int_to_ptr.hbm [resolvable:$true] %s57
      %s59 = sshll.u32 [#allocation5], 4
      %s60 = int_to_ptr.vmem [resolvable:$true] %s59
      %65 = dma.hbm_to_vmem [thread:$0]  %s58, 256, %s60, [#allocation6], 128, 128, 8
    $region13: #{tpu_custom_call.1} parent=1 // pred_fallthru
      _
    // Predicated region
    $region14: #{tpu_custom_call.1} parent=1 // pred_check
      _
    $region15: #{tpu_custom_call.1} parent=1 // pred_check_branch
      %67 = sbr.rel (0) target = $region17
    $region16: #{tpu_custom_call.1} parent=1 // pred_region
      %69 = vsyncadd [#allocation6], 0
      %s70 = sshll.u32 %s3, 4
      %s71 = int_to_ptr.hbm [resolvable:$true] %s70
      %s72 = sshll.u32 [#allocation7], 4
      %s73 = int_to_ptr.vmem [resolvable:$true] %s72
      %78 = dma.hbm_to_vmem [thread:$0]  %s71, 256, %s73, [#allocation6], 128, 128, 8
    $region17: #{tpu_custom_call.1} parent=1 // pred_fallthru
      _
    // Predicated region
    $region18: #{tpu_custom_call.1} parent=1 // pred_check
      _
    $region19: #{tpu_custom_call.1} parent=1 // pred_check_branch
      %80 = sbr.rel (0) target = $region21
    $region20: #{tpu_custom_call.1} parent=1 // pred_region
      _
    $region21: #{tpu_custom_call.1} parent=1 // pred_fallthru
      _
    // Predicated region
    $region22: #{tpu_custom_call.1} parent=1 // pred_check
      _
    $region23: #{tpu_custom_call.1} parent=1 // pred_check_branch
      %82 = sbr.rel (0) target = $region25
    $region24: #{tpu_custom_call.1} parent=1 // pred_region
      _
    $region25: #{tpu_custom_call.1} parent=1 // pred_fallthru
      _
    // Predicated region
    $region26: #{tpu_custom_call.1} parent=1 // pred_check
      _
    $region27: #{tpu_custom_call.1} parent=1 // pred_check_branch
      %84 = sbr.rel (0) target = $region29
    $region28: #{tpu_custom_call.1} parent=1 // pred_region
      _
    $region29: #{tpu_custom_call.1} parent=1 // pred_fallthru
      _
    // Predicated region
    $region30: #{tpu_custom_call.1} parent=1 // pred_check
      _
    $region31: #{tpu_custom_call.1} parent=1 // pred_check_branch
      %86 = sbr.rel (0) target = $region33
    $region32: #{tpu_custom_call.1} parent=1 // pred_region
      _
    $region33: #{tpu_custom_call.1} parent=1 // pred_fallthru
      _
    // Predicated region
    $region34: #{tpu_custom_call.1} parent=1 // pred_check
      _
    $region35: #{tpu_custom_call.1} parent=1 // pred_check_branch
      %88 = sbr.rel (0) target = $region37
    $region36: #{tpu_custom_call.1} parent=1 // pred_region
      %90 = vsyncadd [#allocation9], 0
      %s91 = sshll.u32 %s8, 4
      %s92 = int_to_ptr.hbm [resolvable:$true] %s91
      %s93 = sshll.u32 [#allocation8], 4
      %s94 = int_to_ptr.vmem [resolvable:$true] %s93
      %99 = dma.hbm_to_vmem [thread:$0]  %s92, 512, %s94, [#allocation9], 128, 128, 8
    $region37: #{tpu_custom_call.1} parent=1 // pred_fallthru
      _
    // Predicated region
    $region38: #{tpu_custom_call.1} parent=1 // pred_check
      _
    $region39: #{tpu_custom_call.1} parent=1 // pred_check_branch
      %101 = sbr.rel (0) target = $region41
    $region40: #{tpu_custom_call.1} parent=1 // pred_region
      _
    $region41: #{tpu_custom_call.1} parent=1 // pred_fallthru
      _
    // Predicated region
    $region42: #{tpu_custom_call.1} parent=1 // pred_check
      _
    $region43: #{tpu_custom_call.1} parent=1 // pred_check_branch
      %103 = sbr.rel (0) target = $region45
    $region44: #{tpu_custom_call.1} parent=1 // pred_region
      %105 = vsyncadd [#allocation9], 0
      %s106 = sshll.u32 %s10, 4
      %s107 = int_to_ptr.hbm [resolvable:$true] %s106
      %s108 = sshll.u32 [#allocation10], 4
      %s109 = int_to_ptr.vmem [resolvable:$true] %s108
      %114 = dma.hbm_to_vmem [thread:$0]  %s107, 512, %s109, [#allocation9], 128, 128, 8
    $region45: #{tpu_custom_call.1} parent=1 // pred_fallthru
      _
    // Predicated region
    $region46: #{tpu_custom_call.1} parent=1 // pred_check
      _
    $region47: #{tpu_custom_call.1} parent=1 // pred_check_branch
      %116 = sbr.rel (0) target = $region49
    $region48: #{tpu_custom_call.1} parent=1 // pred_region
      _
    $region49: #{tpu_custom_call.1} parent=1 // pred_fallthru
      _
    // Predicated region
    $region50: #{tpu_custom_call.1} parent=1 // pred_check
      _
    $region51: #{tpu_custom_call.1} parent=1 // pred_check_branch
      %118 = sbr.rel (0) target = $region53
    $region52: #{tpu_custom_call.1} parent=1 // pred_region
      %120 = vsyncadd [#allocation12], 0
      %s121 = sshll.u32 %s12, 4
      %s122 = int_to_ptr.hbm [resolvable:$true] %s121
      %s123 = sshll.u32 [#allocation11], 4
      %s124 = int_to_ptr.vmem [resolvable:$true] %s123
      %129 = dma.hbm_to_vmem [thread:$0]  %s122, 512, %s124, [#allocation12], 128, 128, 8
    $region53: #{tpu_custom_call.1} parent=1 // pred_fallthru
      _
    // Predicated region
    $region54: #{tpu_custom_call.1} parent=1 // pred_check
      _
    $region55: #{tpu_custom_call.1} parent=1 // pred_check_branch
      %131 = sbr.rel (0) target = $region57
    $region56: #{tpu_custom_call.1} parent=1 // pred_region
      _
    $region57: #{tpu_custom_call.1} parent=1 // pred_fallthru
      _
    // Predicated region
    $region58: #{tpu_custom_call.1} parent=1 // pred_check
      _
    $region59: #{tpu_custom_call.1} parent=1 // pred_check_branch
      %133 = sbr.rel (0) target = $region61
    $region60: #{tpu_custom_call.1} parent=1 // pred_region
      %135 = vsyncadd [#allocation12], 0
      %s136 = sshll.u32 %s14, 4
      %s137 = int_to_ptr.hbm [resolvable:$true] %s136
      %s138 = sshll.u32 [#allocation13], 4
      %s139 = int_to_ptr.vmem [resolvable:$true] %s138
      %144 = dma.hbm_to_vmem [thread:$0]  %s137, 512, %s139, [#allocation12], 128, 128, 8
    $region61: #{tpu_custom_call.1} parent=1 // pred_fallthru
      _
    // Predicated region
    $region62: #{tpu_custom_call.1} parent=1 // pred_check
      _
    $region63: #{tpu_custom_call.1} parent=1 // pred_check_branch
      %146 = sbr.rel (0) target = $region65
    $region64: #{tpu_custom_call.1} parent=1 // pred_region
      _
    $region65: #{tpu_custom_call.1} parent=1 // pred_fallthru
      _
    // Predicated region
    $region66: #{tpu_custom_call.1} parent=1 // pred_check
      _
    $region67: #{tpu_custom_call.1} parent=1 // pred_check_branch
      %148 = sbr.rel (0) target = $region69
    $region68: #{tpu_custom_call.1} parent=1 // pred_region
      _
    $region69: #{tpu_custom_call.1} parent=1 // pred_fallthru
      _
    // Predicated region
    $region70: #{tpu_custom_call.1} parent=1 // pred_check
      _
    $region71: #{tpu_custom_call.1} parent=1 // pred_check_branch
      %150 = sbr.rel (0) target = $region73
    $region72: #{tpu_custom_call.1} parent=1 // pred_region
      _
    $region73: #{tpu_custom_call.1} parent=1 // pred_fallthru
      _
    // Predicated region
    $region74: #{tpu_custom_call.1} parent=1 // pred_check
      _
    $region75: #{tpu_custom_call.1} parent=1 // pred_check_branch
      %152 = sbr.rel (0) target = $region77
    $region76: #{tpu_custom_call.1} parent=1 // pred_region
      _
    $region77: #{tpu_custom_call.1} parent=1 // pred_fallthru
      _
    // Predicated region
    $region78: #{tpu_custom_call.1} parent=1 // pred_check
      _
    $region79: #{tpu_custom_call.1} parent=1 // pred_check_branch
      %154 = sbr.rel (0) target = $region81
    $region80: #{tpu_custom_call.1} parent=1 // pred_region
      _
    $region81: #{tpu_custom_call.1} parent=1 // pred_fallthru
      _
    // Predicated region
    $region82: #{tpu_custom_call.1} parent=1 // pred_check
      _
    $region83: #{tpu_custom_call.1} parent=1 // pred_check_branch
      %156 = sbr.rel (0) target = $region85
    $region84: #{tpu_custom_call.1} parent=1 // pred_region
      _
    $region85: #{tpu_custom_call.1} parent=1 // pred_fallthru
      _
    // Predicated region
    $region86: #{tpu_custom_call.1} parent=1 // pred_check
      _
    $region87: #{tpu_custom_call.1} parent=1 // pred_check_branch
      %158 = sbr.rel (0) target = $region89
    $region88: #{tpu_custom_call.1} parent=1 // pred_region
      _
    $region89: #{tpu_custom_call.1} parent=1 // pred_fallthru
      _
    // Predicated region
    $region90: #{tpu_custom_call.1} parent=1 // pred_check
      _
    $region91: #{tpu_custom_call.1} parent=1 // pred_check_branch
      %160 = sbr.rel (0) target = $region93
    $region92: #{tpu_custom_call.1} parent=1 // pred_region
      _
    $region93: #{tpu_custom_call.1} parent=1 // pred_fallthru
      _
    // Predicated region
    $region94: #{tpu_custom_call.1} parent=1 // pred_check
      _
    $region95: #{tpu_custom_call.1} parent=1 // pred_check_branch
      %162 = sbr.rel (0) target = $region97
    $region96: #{tpu_custom_call.1} parent=1 // pred_region
      _
    $region97: #{tpu_custom_call.1} parent=1 // pred_fallthru
      _
    // Predicated region
    $region98: #{tpu_custom_call.1} parent=1 // pred_check
      _
    $region99: #{tpu_custom_call.1} parent=1 // pred_check_branch
      %164 = sbr.rel (0) target = $region101
    $region100: #{tpu_custom_call.1} parent=1 // pred_region
      %166 = dma.done [#allocation3], 256
    $region101: #{tpu_custom_call.1} parent=1 // pred_fallthru
      _
    // Predicated region
    $region102: #{tpu_custom_call.1} parent=1 // pred_check
      _
    $region103: #{tpu_custom_call.1} parent=1 // pred_check_branch
      %168 = sbr.rel (0) target = $region105
    $region104: #{tpu_custom_call.1} parent=1 // pred_region
      %170 = dma.done [#allocation6], 256
    $region105: #{tpu_custom_call.1} parent=1 // pred_fallthru
      _
    // Predicated region
    $region106: #{tpu_custom_call.1} parent=1 // pred_check
      _
    $region107: #{tpu_custom_call.1} parent=1 // pred_check_branch
      %172 = sbr.rel (0) target = $region109
    $region108: #{tpu_custom_call.1} parent=1 // pred_region
      %174 = dma.done [#allocation6], 256
    $region109: #{tpu_custom_call.1} parent=1 // pred_fallthru
      _
    // Predicated region
    $region110: #{tpu_custom_call.1} parent=1 // pred_check
      _
    $region111: #{tpu_custom_call.1} parent=1 // pred_check_branch
      %176 = sbr.rel (0) target = $region113
    $region112: #{tpu_custom_call.1} parent=1 // pred_region
      %178 = dma.done [#allocation9], 512
    $region113: #{tpu_custom_call.1} parent=1 // pred_fallthru
      _
    // Predicated region
    $region114: #{tpu_custom_call.1} parent=1 // pred_check
      _
    $region115: #{tpu_custom_call.1} parent=1 // pred_check_branch
      %180 = sbr.rel (0) target = $region117
    $region116: #{tpu_custom_call.1} parent=1 // pred_region
      %182 = dma.done [#allocation9], 512
    $region117: #{tpu_custom_call.1} parent=1 // pred_fallthru
      _
    // Predicated region
    $region118: #{tpu_custom_call.1} parent=1 // pred_check
      _
    $region119: #{tpu_custom_call.1} parent=1 // pred_check_branch
      %184 = sbr.rel (0) target = $region121
    $region120: #{tpu_custom_call.1} parent=1 // pred_region
      %186 = dma.done [#allocation12], 512
    $region121: #{tpu_custom_call.1} parent=1 // pred_fallthru
      _
    // Predicated region
    $region122: #{tpu_custom_call.1} parent=1 // pred_check
      _
    $region123: #{tpu_custom_call.1} parent=1 // pred_check_branch
      %188 = sbr.rel (0) target = $region125
    $region124: #{tpu_custom_call.1} parent=1 // pred_region
      %190 = dma.done [#allocation12], 512
    $region125: #{tpu_custom_call.1} parent=1 // pred_fallthru
      _
    %v191 = vld [vmem:[#allocation2] sm:$0xff]
    %v192 = vld [vmem:[#allocation2 + $0x8] sm:$0xff]
    %v193 = vld [vmem:[%s1] sm:$0xff]
    %v194 = vld [vmem:[%s1 + $0x8] sm:$0xff]
    %v195 = vld [vmem:[%s1 + $0x10] sm:$0xff]
    %v196 = vld [vmem:[%s1 + $0x18] sm:$0xff]
    %v197 = vld [vmem:[%s4] sm:$0xff]
    %v198 = vld [vmem:[%s4 + $0x8] sm:$0xff]
    %v199 = vld [vmem:[%s4 + $0x10] sm:$0xff]
    %v200 = vld [vmem:[%s4 + $0x18] sm:$0xff]
    %v201 = vld [vmem:[%s5] sm:$0x1]
    %v203 = vperm.slane %v201, 0
    %vm205 = vcmask 261120
    %v207 = vsel %vm205, %v191, 0
    %v210 = vsel %vm205, %v192, 0
    %212 = vmatpush.msra.mxu0 0.0
    %213 = vmatpush.msra.mxu0 0.0
    %214 = vmatpush.msra.mxu0 0.0
    %215 = vmatpush.msra.mxu0 0.0
    %216 = vmatpush.msra.mxu0 0.0
    %217 = vmatpush.msra.mxu0 0.0
    %218 = vmatpush.msra.mxu0 0.0
    %219 = vmatpush.msra.mxu0 0.0
    %220 = vmatpush.msra.mxu0 0.0
    %221 = vmatpush.msra.mxu0 0.0
    %222 = vmatpush.msra.mxu0 0.0
    %223 = vmatpush.msra.mxu0 0.0
    %224 = vmatpush.msra.mxu0 %v200
    %225 = vmatpush.msra.mxu0 %v199
    %226 = vmatpush.msra.mxu0 %v198
    %227 = vmatpush.msra.mxu0 %v197
    %228 = vmatmul.f32.gmra.mxu0 %v207
    %v229 = vpop.f32.mrf.mxu0
    %v230 = vadd.f32 %v203, %v229
    %231 = vmatmul.f32.gmra.mxu0 %v210
    %v232 = vpop.f32.mrf.mxu0
    %v233 = vadd.f32 %v203, %v232
    %234 = vdwg.mxu0
    %v235 = vld [vmem:[#allocation5] sm:$0xff]
    %v236 = vld [vmem:[#allocation5 + $0x8] sm:$0xff]
    %238 = vrot.lane.b32.xlu0 %v230, 96
    %v239 = vpop.permute.xlu0 %238
    %vm240 = vcmask 64512
    %v241 = vsel %vm240, %v230, 0
    %v243 = vsel %vm240, %v239, 0
    %245 = vmatpush.xpose.msra.mxu0 0.0
    %246 = vmatpush.xpose.msra.mxu0 0.0
    %247 = vmatpush.xpose.msra.mxu0 0.0
    %248 = vmatpush.xpose.msra.mxu0 0.0
    %249 = vmatpush.xpose.msra.mxu0 0.0
    %250 = vmatpush.xpose.msra.mxu0 0.0
    %251 = vmatpush.xpose.msra.mxu0 0.0
    %252 = vmatpush.xpose.msra.mxu0 0.0
    %253 = vmatpush.xpose.msra.mxu0 0.0
    %254 = vmatpush.xpose.msra.mxu0 0.0
    %255 = vmatpush.xpose.msra.mxu0 0.0
    %256 = vmatpush.xpose.msra.mxu0 0.0
    %257 = vmatpush.xpose.msra.mxu0 0.0
    %258 = vmatpush.xpose.msra.mxu0 0.0
    %259 = vmatpush.xpose.msra.mxu0 0.0
    %260 = vmatpush.xpose.msra.mxu0 %v243
    %261 = vmatmul.f32.gmra.mxu0 %v241
    %v262 = vpop.f32.mrf.mxu0
    %v263 = vadd.f32 0.0, %v262
    %264 = vdwg.mxu0
    %266 = vrot.lane.b32.xlu0 %v233, 96
    %v267 = vpop.permute.xlu0 %266
    %v268 = vsel %vm240, %v233, 0
    %v270 = vsel %vm240, %v267, 0
    %272 = vmatpush.xpose.msra.mxu0 0.0
    %273 = vmatpush.xpose.msra.mxu0 0.0
    %274 = vmatpush.xpose.msra.mxu0 0.0
    %275 = vmatpush.xpose.msra.mxu0 0.0
    %276 = vmatpush.xpose.msra.mxu0 0.0
    %277 = vmatpush.xpose.msra.mxu0 0.0
    %278 = vmatpush.xpose.msra.mxu0 0.0
    %279 = vmatpush.xpose.msra.mxu0 0.0
    %280 = vmatpush.xpose.msra.mxu0 0.0
    %281 = vmatpush.xpose.msra.mxu0 0.0
    %282 = vmatpush.xpose.msra.mxu0 0.0
    %283 = vmatpush.xpose.msra.mxu0 0.0
    %284 = vmatpush.xpose.msra.mxu0 0.0
    %285 = vmatpush.xpose.msra.mxu0 0.0
    %286 = vmatpush.xpose.msra.mxu0 0.0
    %287 = vmatpush.xpose.msra.mxu0 %v270
    %288 = vmatmul.f32.gmra.mxu0 %v268
    %v289 = vpop.f32.mrf.mxu0
    %v290 = vadd.f32 0.0, %v289
    %291 = vdwg.mxu0
    %v292 = vmul.f32 %v263, 0.35355338
    %v293 = vmul.f32 %v290, 0.35355338
    %v294 = vadd.f32 %v292, %v235
    %v295 = vadd.f32 %v293, %v236
    %v296 = vsel %vm240, %v294, -inf
    %297 = vmax.xlane.f32.xlu0 %v296
    %v298 = vpop.xlane.xlu0 %297
    %v299 = vsel %vm240, %v295, -inf
    %300 = vmax.xlane.f32.xlu0 %v299
    %v301 = vpop.xlane.xlu0 %300
    %v302 = vsub.f32 %v294, %v298
    %v303 = vsub.f32 %v295, %v301
    %v304 = vmul.f32 %v302, 1.442695
    %v305 = vpow.pop %v304
    %v306 = vmul.f32 %v303, 1.442695
    %v307 = vpow.pop %v306
    %v308 = vsel %vm240, %v305, 0.0
    %309 = vadd.xlane.f32.xlu0 %v308
    %v310 = vpop.xlane.xlu0 %309
    %v311 = vsel %vm240, %v307, 0.0
    %312 = vadd.xlane.f32.xlu0 %v311
    %v313 = vpop.xlane.xlu0 %312
    %v314 = vrcp.pop %v310
    %v315 = vrcp.pop %v313
    %v316 = vmul.f32 %v305, %v314
    %v317 = vmul.f32 %v307, %v315
    %v318 = vadd.f32 %v316, 0.0
    %v319 = vadd.f32 %v317, 0.0
    %320 = vrot.lane.b32.xlu0 %v230, 64
    %v321 = vpop.permute.xlu0 %320
    %v324 = vsel %vm240, %v316, 0
    %326 = vmatpush.msra.mxu0 0.0
    %327 = vmatpush.msra.mxu0 0.0
    %328 = vmatpush.msra.mxu0 0.0
    %329 = vmatpush.msra.mxu0 0.0
    %330 = vmatpush.msra.mxu0 0.0
    %331 = vmatpush.msra.mxu0 0.0
    %332 = vmatpush.msra.mxu0 0.0
    %333 = vmatpush.msra.mxu0 0.0
    %334 = vmatpush.msra.mxu0 0.0
    %335 = vmatpush.msra.mxu0 0.0
    %336 = vmatpush.msra.mxu0 0.0
    %337 = vmatpush.msra.mxu0 0.0
    %338 = vmatpush.msra.mxu0 0.0
    %339 = vmatpush.msra.mxu0 0.0
    %340 = vmatpush.msra.mxu0 0.0
    %341 = vmatpush.msra.mxu0 %v321
    %342 = vmatmul.f32.gmra.mxu0 %v324
    %v343 = vpop.f32.mrf.mxu0
    %v344 = vadd.f32 0.0, %v343
    %345 = vdwg.mxu0
    %346 = vrot.lane.b32.xlu0 %v233, 64
    %v347 = vpop.permute.xlu0 %346
    %v350 = vsel %vm240, %v317, 0
    %352 = vmatpush.msra.mxu0 0.0
    %353 = vmatpush.msra.mxu0 0.0
    %354 = vmatpush.msra.mxu0 0.0
    %355 = vmatpush.msra.mxu0 0.0
    %356 = vmatpush.msra.mxu0 0.0
    %357 = vmatpush.msra.mxu0 0.0
    %358 = vmatpush.msra.mxu0 0.0
    %359 = vmatpush.msra.mxu0 0.0
    %360 = vmatpush.msra.mxu0 0.0
    %361 = vmatpush.msra.mxu0 0.0
    %362 = vmatpush.msra.mxu0 0.0
    %363 = vmatpush.msra.mxu0 0.0
    %364 = vmatpush.msra.mxu0 0.0
    %365 = vmatpush.msra.mxu0 0.0
    %366 = vmatpush.msra.mxu0 0.0
    %367 = vmatpush.msra.mxu0 %v347
    %368 = vmatmul.f32.gmra.mxu0 %v350
    %v369 = vpop.f32.mrf.mxu0
    %v370 = vadd.f32 0.0, %v369
    %371 = vdwg.mxu0
    %372 = vrot.lane.b32.xlu0 %v230, 120
    %v373 = vpop.permute.xlu0 %372
    %374 = vrot.lane.b32.xlu0 %v230, 88
    %v375 = vpop.permute.xlu0 %374
    %v376 = vsel %vm240, %v373, 0
    %v378 = vsel %vm240, %v375, 0
    %380 = vmatpush.xpose.msra.mxu0 0.0
    %381 = vmatpush.xpose.msra.mxu0 0.0
    %382 = vmatpush.xpose.msra.mxu0 0.0
    %383 = vmatpush.xpose.msra.mxu0 0.0
    %384 = vmatpush.xpose.msra.mxu0 0.0
    %385 = vmatpush.xpose.msra.mxu0 0.0
    %386 = vmatpush.xpose.msra.mxu0 0.0
    %387 = vmatpush.xpose.msra.mxu0 0.0
    %388 = vmatpush.xpose.msra.mxu0 0.0
    %389 = vmatpush.xpose.msra.mxu0 0.0
    %390 = vmatpush.xpose.msra.mxu0 0.0
    %391 = vmatpush.xpose.msra.mxu0 0.0
    %392 = vmatpush.xpose.msra.mxu0 0.0
    %393 = vmatpush.xpose.msra.mxu0 0.0
    %394 = vmatpush.xpose.msra.mxu0 0.0
    %395 = vmatpush.xpose.msra.mxu0 %v378
    %396 = vmatmul.f32.gmra.mxu0 %v376
    %v397 = vpop.f32.mrf.mxu0
    %v398 = vadd.f32 0.0, %v397
    %399 = vdwg.mxu0
    %400 = vrot.lane.b32.xlu0 %v233, 120
    %v401 = vpop.permute.xlu0 %400
    %402 = vrot.lane.b32.xlu0 %v233, 88
    %v403 = vpop.permute.xlu0 %402
    %v404 = vsel %vm240, %v401, 0
    %v406 = vsel %vm240, %v403, 0
    %408 = vmatpush.xpose.msra.mxu0 0.0
    %409 = vmatpush.xpose.msra.mxu0 0.0
    %410 = vmatpush.xpose.msra.mxu0 0.0
    %411 = vmatpush.xpose.msra.mxu0 0.0
    %412 = vmatpush.xpose.msra.mxu0 0.0
    %413 = vmatpush.xpose.msra.mxu0 0.0
    %414 = vmatpush.xpose.msra.mxu0 0.0
    %415 = vmatpush.xpose.msra.mxu0 0.0
    %416 = vmatpush.xpose.msra.mxu0 0.0
    %417 = vmatpush.xpose.msra.mxu0 0.0
    %418 = vmatpush.xpose.msra.mxu0 0.0
    %419 = vmatpush.xpose.msra.mxu0 0.0
    %420 = vmatpush.xpose.msra.mxu0 0.0
    %421 = vmatpush.xpose.msra.mxu0 0.0
    %422 = vmatpush.xpose.msra.mxu0 0.0
    %423 = vmatpush.xpose.msra.mxu0 %v406
    %424 = vmatmul.f32.gmra.mxu0 %v404
    %v425 = vpop.f32.mrf.mxu0
    %v426 = vadd.f32 0.0, %v425
    %427 = vdwg.mxu0
    %v428 = vmul.f32 %v398, 0.35355338
    %v429 = vmul.f32 %v426, 0.35355338
    %v430 = vadd.f32 %v428, %v235
    %v431 = vadd.f32 %v429, %v236
    %v432 = vsel %vm240, %v430, -inf
    %433 = vmax.xlane.f32.xlu0 %v432
    %v434 = vpop.xlane.xlu0 %433
    %v435 = vsel %vm240, %v431, -inf
    %436 = vmax.xlane.f32.xlu0 %v435
    %v437 = vpop.xlane.xlu0 %436
    %v438 = vsub.f32 %v430, %v434
    %v439 = vsub.f32 %v431, %v437
    %v440 = vmul.f32 %v438, 1.442695
    %v441 = vpow.pop %v440
    %v442 = vmul.f32 %v439, 1.442695
    %v443 = vpow.pop %v442
    %v444 = vsel %vm240, %v441, 0.0
    %445 = vadd.xlane.f32.xlu0 %v444
    %v446 = vpop.xlane.xlu0 %445
    %v447 = vsel %vm240, %v443, 0.0
    %448 = vadd.xlane.f32.xlu0 %v447
    %v449 = vpop.xlane.xlu0 %448
    %v450 = vrcp.pop %v446
    %v451 = vrcp.pop %v449
    %v452 = vmul.f32 %v441, %v450
    %v453 = vmul.f32 %v443, %v451
    %v454 = vadd.f32 %v318, %v452
    %v455 = vadd.f32 %v319, %v453
    %456 = vrot.lane.b32.xlu0 %v230, 56
    %v457 = vpop.permute.xlu0 %456
    %v460 = vsel %vm240, %v452, 0
    %462 = vmatpush.msra.mxu0 0.0
    %463 = vmatpush.msra.mxu0 0.0
    %464 = vmatpush.msra.mxu0 0.0
    %465 = vmatpush.msra.mxu0 0.0
    %466 = vmatpush.msra.mxu0 0.0
    %467 = vmatpush.msra.mxu0 0.0
    %468 = vmatpush.msra.mxu0 0.0
    %469 = vmatpush.msra.mxu0 0.0
    %470 = vmatpush.msra.mxu0 0.0
    %471 = vmatpush.msra.mxu0 0.0
    %472 = vmatpush.msra.mxu0 0.0
    %473 = vmatpush.msra.mxu0 0.0
    %474 = vmatpush.msra.mxu0 0.0
    %475 = vmatpush.msra.mxu0 0.0
    %476 = vmatpush.msra.mxu0 0.0
    %477 = vmatpush.msra.mxu0 %v457
    %478 = vmatmul.f32.gmra.mxu0 %v460
    %v479 = vpop.f32.mrf.mxu0
    %v480 = vadd.f32 0.0, %v479
    %481 = vdwg.mxu0
    %482 = vrot.lane.b32.xlu0 %v233, 56
    %v483 = vpop.permute.xlu0 %482
    %v486 = vsel %vm240, %v453, 0
    %488 = vmatpush.msra.mxu0 0.0
    %489 = vmatpush.msra.mxu0 0.0
    %490 = vmatpush.msra.mxu0 0.0
    %491 = vmatpush.msra.mxu0 0.0
    %492 = vmatpush.msra.mxu0 0.0
    %493 = vmatpush.msra.mxu0 0.0
    %494 = vmatpush.msra.mxu0 0.0
    %495 = vmatpush.msra.mxu0 0.0
    %496 = vmatpush.msra.mxu0 0.0
    %497 = vmatpush.msra.mxu0 0.0
    %498 = vmatpush.msra.mxu0 0.0
    %499 = vmatpush.msra.mxu0 0.0
    %500 = vmatpush.msra.mxu0 0.0
    %501 = vmatpush.msra.mxu0 0.0
    %502 = vmatpush.msra.mxu0 0.0
    %503 = vmatpush.msra.mxu0 %v483
    %504 = vmatmul.f32.gmra.mxu0 %v486
    %v505 = vpop.f32.mrf.mxu0
    %v506 = vadd.f32 0.0, %v505
    %507 = vdwg.mxu0
    %508 = vrot.lane.b32.xlu0 %v230, 112
    %v509 = vpop.permute.xlu0 %508
    %510 = vrot.lane.b32.xlu0 %v230, 80
    %v511 = vpop.permute.xlu0 %510
    %v512 = vsel %vm240, %v509, 0
    %v514 = vsel %vm240, %v511, 0
    %516 = vmatpush.xpose.msra.mxu0 0.0
    %517 = vmatpush.xpose.msra.mxu0 0.0
    %518 = vmatpush.xpose.msra.mxu0 0.0
    %519 = vmatpush.xpose.msra.mxu0 0.0
    %520 = vmatpush.xpose.msra.mxu0 0.0
    %521 = vmatpush.xpose.msra.mxu0 0.0
    %522 = vmatpush.xpose.msra.mxu0 0.0
    %523 = vmatpush.xpose.msra.mxu0 0.0
    %524 = vmatpush.xpose.msra.mxu0 0.0
    %525 = vmatpush.xpose.msra.mxu0 0.0
    %526 = vmatpush.xpose.msra.mxu0 0.0
    %527 = vmatpush.xpose.msra.mxu0 0.0
    %528 = vmatpush.xpose.msra.mxu0 0.0
    %529 = vmatpush.xpose.msra.mxu0 0.0
    %530 = vmatpush.xpose.msra.mxu0 0.0
    %531 = vmatpush.xpose.msra.mxu0 %v514
    %532 = vmatmul.f32.gmra.mxu0 %v512
    %v533 = vpop.f32.mrf.mxu0
    %v534 = vadd.f32 0.0, %v533
    %535 = vdwg.mxu0
    %536 = vrot.lane.b32.xlu0 %v233, 112
    %v537 = vpop.permute.xlu0 %536
    %538 = vrot.lane.b32.xlu0 %v233, 80
    %v539 = vpop.permute.xlu0 %538
    %v540 = vsel %vm240, %v537, 0
    %v542 = vsel %vm240, %v539, 0
    %544 = vmatpush.xpose.msra.mxu0 0.0
    %545 = vmatpush.xpose.msra.mxu0 0.0
    %546 = vmatpush.xpose.msra.mxu0 0.0
    %547 = vmatpush.xpose.msra.mxu0 0.0
    %548 = vmatpush.xpose.msra.mxu0 0.0
    %549 = vmatpush.xpose.msra.mxu0 0.0
    %550 = vmatpush.xpose.msra.mxu0 0.0
    %551 = vmatpush.xpose.msra.mxu0 0.0
    %552 = vmatpush.xpose.msra.mxu0 0.0
    %553 = vmatpush.xpose.msra.mxu0 0.0
    %554 = vmatpush.xpose.msra.mxu0 0.0
    %555 = vmatpush.xpose.msra.mxu0 0.0
    %556 = vmatpush.xpose.msra.mxu0 0.0
    %557 = vmatpush.xpose.msra.mxu0 0.0
    %558 = vmatpush.xpose.msra.mxu0 0.0
    %559 = vmatpush.xpose.msra.mxu0 %v542
    %560 = vmatmul.f32.gmra.mxu0 %v540
    %v561 = vpop.f32.mrf.mxu0
    %v562 = vadd.f32 0.0, %v561
    %563 = vdwg.mxu0
    %v564 = vmul.f32 %v534, 0.35355338
    %v565 = vmul.f32 %v562, 0.35355338
    %v566 = vadd.f32 %v564, %v235
    %v567 = vadd.f32 %v565, %v236
    %v568 = vsel %vm240, %v566, -inf
    %569 = vmax.xlane.f32.xlu0 %v568
    %v570 = vpop.xlane.xlu0 %569
    %v571 = vsel %vm240, %v567, -inf
    %572 = vmax.xlane.f32.xlu0 %v571
    %v573 = vpop.xlane.xlu0 %572
    %v574 = vsub.f32 %v566, %v570
    %v575 = vsub.f32 %v567, %v573
    %v576 = vmul.f32 %v574, 1.442695
    %v577 = vpow.pop %v576
    %v578 = vmul.f32 %v575, 1.442695
    %v579 = vpow.pop %v578
    %v580 = vsel %vm240, %v577, 0.0
    %581 = vadd.xlane.f32.xlu0 %v580
    %v582 = vpop.xlane.xlu0 %581
    %v583 = vsel %vm240, %v579, 0.0
    %584 = vadd.xlane.f32.xlu0 %v583
    %v585 = vpop.xlane.xlu0 %584
    %v586 = vrcp.pop %v582
    %v587 = vrcp.pop %v585
    %v588 = vmul.f32 %v577, %v586
    %v589 = vmul.f32 %v579, %v587
    %v590 = vadd.f32 %v454, %v588
    %v591 = vadd.f32 %v455, %v589
    %592 = vrot.lane.b32.xlu0 %v230, 48
    %v593 = vpop.permute.xlu0 %592
    %v596 = vsel %vm240, %v588, 0
    %598 = vmatpush.msra.mxu0 0.0
    %599 = vmatpush.msra.mxu0 0.0
    %600 = vmatpush.msra.mxu0 0.0
    %601 = vmatpush.msra.mxu0 0.0
    %602 = vmatpush.msra.mxu0 0.0
    %603 = vmatpush.msra.mxu0 0.0
    %604 = vmatpush.msra.mxu0 0.0
    %605 = vmatpush.msra.mxu0 0.0
    %606 = vmatpush.msra.mxu0 0.0
    %607 = vmatpush.msra.mxu0 0.0
    %608 = vmatpush.msra.mxu0 0.0
    %609 = vmatpush.msra.mxu0 0.0
    %610 = vmatpush.msra.mxu0 0.0
    %611 = vmatpush.msra.mxu0 0.0
    %612 = vmatpush.msra.mxu0 0.0
    %613 = vmatpush.msra.mxu0 %v593
    %614 = vmatmul.f32.gmra.mxu0 %v596
    %v615 = vpop.f32.mrf.mxu0
    %v616 = vadd.f32 0.0, %v615
    %617 = vdwg.mxu0
    %618 = vrot.lane.b32.xlu0 %v233, 48
    %v619 = vpop.permute.xlu0 %618
    %v622 = vsel %vm240, %v589, 0
    %624 = vmatpush.msra.mxu0 0.0
    %625 = vmatpush.msra.mxu0 0.0
    %626 = vmatpush.msra.mxu0 0.0
    %627 = vmatpush.msra.mxu0 0.0
    %628 = vmatpush.msra.mxu0 0.0
    %629 = vmatpush.msra.mxu0 0.0
    %630 = vmatpush.msra.mxu0 0.0
    %631 = vmatpush.msra.mxu0 0.0
    %632 = vmatpush.msra.mxu0 0.0
    %633 = vmatpush.msra.mxu0 0.0
    %634 = vmatpush.msra.mxu0 0.0
    %635 = vmatpush.msra.mxu0 0.0
    %636 = vmatpush.msra.mxu0 0.0
    %637 = vmatpush.msra.mxu0 0.0
    %638 = vmatpush.msra.mxu0 0.0
    %639 = vmatpush.msra.mxu0 %v619
    %640 = vmatmul.f32.gmra.mxu0 %v622
    %v641 = vpop.f32.mrf.mxu0
    %v642 = vadd.f32 0.0, %v641
    %643 = vdwg.mxu0
    %644 = vrot.lane.b32.xlu0 %v230, 104
    %v645 = vpop.permute.xlu0 %644
    %646 = vrot.lane.b32.xlu0 %v230, 72
    %v647 = vpop.permute.xlu0 %646
    %v648 = vsel %vm240, %v645, 0
    %v650 = vsel %vm240, %v647, 0
    %652 = vmatpush.xpose.msra.mxu0 0.0
    %653 = vmatpush.xpose.msra.mxu0 0.0
    %654 = vmatpush.xpose.msra.mxu0 0.0
    %655 = vmatpush.xpose.msra.mxu0 0.0
    %656 = vmatpush.xpose.msra.mxu0 0.0
    %657 = vmatpush.xpose.msra.mxu0 0.0
    %658 = vmatpush.xpose.msra.mxu0 0.0
    %659 = vmatpush.xpose.msra.mxu0 0.0
    %660 = vmatpush.xpose.msra.mxu0 0.0
    %661 = vmatpush.xpose.msra.mxu0 0.0
    %662 = vmatpush.xpose.msra.mxu0 0.0
    %663 = vmatpush.xpose.msra.mxu0 0.0
    %664 = vmatpush.xpose.msra.mxu0 0.0
    %665 = vmatpush.xpose.msra.mxu0 0.0
    %666 = vmatpush.xpose.msra.mxu0 0.0
    %667 = vmatpush.xpose.msra.mxu0 %v650
    %668 = vmatmul.f32.gmra.mxu0 %v648
    %v669 = vpop.f32.mrf.mxu0
    %v670 = vadd.f32 0.0, %v669
    %671 = vdwg.mxu0
    %672 = vrot.lane.b32.xlu0 %v233, 104
    %v673 = vpop.permute.xlu0 %672
    %674 = vrot.lane.b32.xlu0 %v233, 72
    %v675 = vpop.permute.xlu0 %674
    %v676 = vsel %vm240, %v673, 0
    %v678 = vsel %vm240, %v675, 0
    %680 = vmatpush.xpose.msra.mxu0 0.0
    %681 = vmatpush.xpose.msra.mxu0 0.0
    %682 = vmatpush.xpose.msra.mxu0 0.0
    %683 = vmatpush.xpose.msra.mxu0 0.0
    %684 = vmatpush.xpose.msra.mxu0 0.0
    %685 = vmatpush.xpose.msra.mxu0 0.0
    %686 = vmatpush.xpose.msra.mxu0 0.0
    %687 = vmatpush.xpose.msra.mxu0 0.0
    %688 = vmatpush.xpose.msra.mxu0 0.0
    %689 = vmatpush.xpose.msra.mxu0 0.0
    %690 = vmatpush.xpose.msra.mxu0 0.0
    %691 = vmatpush.xpose.msra.mxu0 0.0
    %692 = vmatpush.xpose.msra.mxu0 0.0
    %693 = vmatpush.xpose.msra.mxu0 0.0
    %694 = vmatpush.xpose.msra.mxu0 0.0
    %695 = vmatpush.xpose.msra.mxu0 %v678
    %696 = vmatmul.f32.gmra.mxu0 %v676
    %v697 = vpop.f32.mrf.mxu0
    %v698 = vadd.f32 0.0, %v697
    %699 = vdwg.mxu0
    %v700 = vmul.f32 %v670, 0.35355338
    %v701 = vmul.f32 %v698, 0.35355338
    %v702 = vadd.f32 %v700, %v235
    %v703 = vadd.f32 %v701, %v236
    %v704 = vsel %vm240, %v702, -inf
    %705 = vmax.xlane.f32.xlu0 %v704
    %v706 = vpop.xlane.xlu0 %705
    %v707 = vsel %vm240, %v703, -inf
    %708 = vmax.xlane.f32.xlu0 %v707
    %v709 = vpop.xlane.xlu0 %708
    %v710 = vsub.f32 %v702, %v706
    %v711 = vsub.f32 %v703, %v709
    %v712 = vmul.f32 %v710, 1.442695
    %v713 = vpow.pop %v712
    %v714 = vmul.f32 %v711, 1.442695
    %v715 = vpow.pop %v714
    %v716 = vsel %vm240, %v713, 0.0
    %717 = vadd.xlane.f32.xlu0 %v716
    %v718 = vpop.xlane.xlu0 %717
    %v719 = vsel %vm240, %v715, 0.0
    %720 = vadd.xlane.f32.xlu0 %v719
    %v721 = vpop.xlane.xlu0 %720
    %v722 = vrcp.pop %v718
    %v723 = vrcp.pop %v721
    %v724 = vmul.f32 %v713, %v722
    %v725 = vmul.f32 %v715, %v723
    %v726 = vadd.f32 %v590, %v724
    %v727 = vadd.f32 %v591, %v725
    %728 = vrot.lane.b32.xlu0 %v230, 40
    %v729 = vpop.permute.xlu0 %728
    %v732 = vsel %vm240, %v724, 0
    %734 = vmatpush.msra.mxu0 0.0
    %735 = vmatpush.msra.mxu0 0.0
    %736 = vmatpush.msra.mxu0 0.0
    %737 = vmatpush.msra.mxu0 0.0
    %738 = vmatpush.msra.mxu0 0.0
    %739 = vmatpush.msra.mxu0 0.0
    %740 = vmatpush.msra.mxu0 0.0
    %741 = vmatpush.msra.mxu0 0.0
    %742 = vmatpush.msra.mxu0 0.0
    %743 = vmatpush.msra.mxu0 0.0
    %744 = vmatpush.msra.mxu0 0.0
    %745 = vmatpush.msra.mxu0 0.0
    %746 = vmatpush.msra.mxu0 0.0
    %747 = vmatpush.msra.mxu0 0.0
    %748 = vmatpush.msra.mxu0 0.0
    %749 = vmatpush.msra.mxu0 %v729
    %750 = vmatmul.f32.gmra.mxu0 %v732
    %v751 = vpop.f32.mrf.mxu0
    %v752 = vadd.f32 0.0, %v751
    %753 = vdwg.mxu0
    %754 = vrot.lane.b32.xlu0 %v233, 40
    %v755 = vpop.permute.xlu0 %754
    %v758 = vsel %vm240, %v725, 0
    %760 = vmatpush.msra.mxu0 0.0
    %761 = vmatpush.msra.mxu0 0.0
    %762 = vmatpush.msra.mxu0 0.0
    %763 = vmatpush.msra.mxu0 0.0
    %764 = vmatpush.msra.mxu0 0.0
    %765 = vmatpush.msra.mxu0 0.0
    %766 = vmatpush.msra.mxu0 0.0
    %767 = vmatpush.msra.mxu0 0.0
    %768 = vmatpush.msra.mxu0 0.0
    %769 = vmatpush.msra.mxu0 0.0
    %770 = vmatpush.msra.mxu0 0.0
    %771 = vmatpush.msra.mxu0 0.0
    %772 = vmatpush.msra.mxu0 0.0
    %773 = vmatpush.msra.mxu0 0.0
    %774 = vmatpush.msra.mxu0 0.0
    %775 = vmatpush.msra.mxu0 %v755
    %776 = vmatmul.f32.gmra.mxu0 %v758
    %v777 = vpop.f32.mrf.mxu0
    %v778 = vadd.f32 0.0, %v777
    %779 = vdwg.mxu0
    %782 = vrot.lane.b32.xlu0 %v480, 8
    %v783 = vpop.permute.xlu0 %782
    %784 = vrot.lane.b32.xlu0 %v506, 8
    %v785 = vpop.permute.xlu0 %784
    %790 = vrot.lane.b32.xlu0 %v616, 16
    %v791 = vpop.permute.xlu0 %790
    %792 = vrot.lane.b32.xlu0 %v642, 16
    %v793 = vpop.permute.xlu0 %792
    %798 = vrot.lane.b32.xlu0 %v752, 24
    %v799 = vpop.permute.xlu0 %798
    %800 = vrot.lane.b32.xlu0 %v778, 24
    %v801 = vpop.permute.xlu0 %800
    %v804 = vsel %vm240, %v344, %v783
    %v805 = vsel %vm240, %v370, %v785
    %vm806 = vcmask 130048
    %v807 = vsel %vm806, %v804, %v791
    %v808 = vsel %vm806, %v805, %v793
    %vm809 = vcmask 195584
    %v810 = vsel %vm809, %v807, %v799
    %v811 = vsel %vm809, %v808, %v801
    %v812 = vmul.f32 %v726, 0.25
    %v813 = vmul.f32 %v727, 0.25
    %v814 = vld [vmem:[%s6] sm:$0xff]
    %v815 = vld [vmem:[%s6 + $0x8] sm:$0xff]
    %v816 = vld [vmem:[%s6 + $0x10] sm:$0xff]
    %v817 = vld [vmem:[%s6 + $0x18] sm:$0xff]
    %v818 = vld [vmem:[%s7] sm:$0x1]
    %v820 = vperm.slane %v818, 0
    %v823 = vsel %vm205, %v810, 0
    %v826 = vsel %vm205, %v811, 0
    %828 = vmatpush.msra.mxu0 0.0
    %829 = vmatpush.msra.mxu0 0.0
    %830 = vmatpush.msra.mxu0 0.0
    %831 = vmatpush.msra.mxu0 0.0
    %832 = vmatpush.msra.mxu0 0.0
    %833 = vmatpush.msra.mxu0 0.0
    %834 = vmatpush.msra.mxu0 0.0
    %835 = vmatpush.msra.mxu0 0.0
    %836 = vmatpush.msra.mxu0 0.0
    %837 = vmatpush.msra.mxu0 0.0
    %838 = vmatpush.msra.mxu0 0.0
    %839 = vmatpush.msra.mxu0 0.0
    %840 = vmatpush.msra.mxu0 %v817
    %841 = vmatpush.msra.mxu0 %v816
    %842 = vmatpush.msra.mxu0 %v815
    %843 = vmatpush.msra.mxu0 %v814
    %844 = vmatmul.f32.gmra.mxu0 %v823
    %v845 = vpop.f32.mrf.mxu0
    %v846 = vadd.f32 %v820, %v845
    %847 = vmatmul.f32.gmra.mxu0 %v826
    %v848 = vpop.f32.mrf.mxu0
    %v849 = vadd.f32 %v820, %v848
    %850 = vdwg.mxu0
    %v851 = vadd.f32 %v191, %v846
    %v852 = vadd.f32 %v192, %v849
    %v853 = vld [vmem:[%s18] sm:$0x1]
    %v855 = vperm.slane %v853, 0
    %v857 = vmul.f32 %v851, %v855
    %v858 = vmul.f32 %v852, %v855
    %v859 = vld [vmem:[%s19] sm:$0x1]
    %v861 = vperm.slane %v859, 0
    %v863 = vadd.f32 %v857, %v861
    %v864 = vadd.f32 %v858, %v861
    %v865 = vld [vmem:[#allocation8] sm:$0xff]
    %v866 = vld [vmem:[#allocation8 + $0x8] sm:$0xff]
    %v867 = vld [vmem:[#allocation8 + $0x10] sm:$0xff]
    %v868 = vld [vmem:[#allocation8 + $0x18] sm:$0xff]
    %v869 = vld [vmem:[%s9] sm:$0x1]
    %v871 = vperm.slane %v869, 0
    %v874 = vsel %vm205, %v863, 0
    %v877 = vsel %vm205, %v864, 0
    %879 = vmatpush.msra.mxu0 0.0
    %880 = vmatpush.msra.mxu0 0.0
    %881 = vmatpush.msra.mxu0 0.0
    %882 = vmatpush.msra.mxu0 0.0
    %883 = vmatpush.msra.mxu0 0.0
    %884 = vmatpush.msra.mxu0 0.0
    %885 = vmatpush.msra.mxu0 0.0
    %886 = vmatpush.msra.mxu0 0.0
    %887 = vmatpush.msra.mxu0 0.0
    %888 = vmatpush.msra.mxu0 0.0
    %889 = vmatpush.msra.mxu0 0.0
    %890 = vmatpush.msra.mxu0 0.0
    %891 = vmatpush.msra.mxu0 %v868
    %892 = vmatpush.msra.mxu0 %v867
    %893 = vmatpush.msra.mxu0 %v866
    %894 = vmatpush.msra.mxu0 %v865
    %895 = vmatmul.f32.gmra.mxu0 %v874
    %v896 = vpop.f32.mrf.mxu0
    %v897 = vadd.f32 %v871, %v896
    %898 = vmatmul.f32.gmra.mxu0 %v877
    %v899 = vpop.f32.mrf.mxu0
    %v900 = vadd.f32 %v871, %v899
    %901 = vdwg.mxu0
    %v902 = vld [vmem:[#allocation10] sm:$0xff]
    %v903 = vld [vmem:[#allocation10 + $0x8] sm:$0xff]
    %v904 = vld [vmem:[#allocation10 + $0x10] sm:$0xff]
    %v905 = vld [vmem:[#allocation10 + $0x18] sm:$0xff]
    %v906 = vld [vmem:[%s11] sm:$0x1]
    %v908 = vperm.slane %v906, 0
    %v911 = vsel %vm205, %v193, 0
    %v914 = vsel %vm205, %v194, 0
    %v917 = vsel %vm205, %v195, 0
    %v920 = vsel %vm205, %v196, 0
    %922 = vmatpush.msra.mxu0 0.0
    %923 = vmatpush.msra.mxu0 0.0
    %924 = vmatpush.msra.mxu0 0.0
    %925 = vmatpush.msra.mxu0 0.0
    %926 = vmatpush.msra.mxu0 0.0
    %927 = vmatpush.msra.mxu0 0.0
    %928 = vmatpush.msra.mxu0 0.0
    %929 = vmatpush.msra.mxu0 0.0
    %930 = vmatpush.msra.mxu0 0.0
    %931 = vmatpush.msra.mxu0 0.0
    %932 = vmatpush.msra.mxu0 0.0
    %933 = vmatpush.msra.mxu0 0.0
    %934 = vmatpush.msra.mxu0 %v905
    %935 = vmatpush.msra.mxu0 %v904
    %936 = vmatpush.msra.mxu0 %v903
    %937 = vmatpush.msra.mxu0 %v902
    %938 = vmatmul.f32.gmra.mxu0 %v911
    %v939 = vpop.f32.mrf.mxu0
    %v940 = vadd.f32 %v908, %v939
    %941 = vmatmul.f32.gmra.mxu0 %v914
    %v942 = vpop.f32.mrf.mxu0
    %v943 = vadd.f32 %v908, %v942
    %944 = vmatmul.f32.gmra.mxu0 %v917
    %v945 = vpop.f32.mrf.mxu0
    %v946 = vadd.f32 %v908, %v945
    %947 = vmatmul.f32.gmra.mxu0 %v920
    %v948 = vpop.f32.mrf.mxu0
    %v949 = vadd.f32 %v908, %v948
    %950 = vdwg.mxu0
    %v951 = vld [vmem:[#allocation7] sm:$0xff]
    %v952 = vld [vmem:[#allocation7 + $0x8] sm:$0xff]
    %v954 = vsel %vm240, %v897, 0
    %v957 = vsel %vm240, %v940, 0
    %v960 = vsel %vm240, %v943, 0
    %962 = vmatpush.xpose.msra.mxu0 0.0
    %963 = vmatpush.xpose.msra.mxu0 0.0
    %964 = vmatpush.xpose.msra.mxu0 0.0
    %965 = vmatpush.xpose.msra.mxu0 0.0
    %966 = vmatpush.xpose.msra.mxu0 0.0
    %967 = vmatpush.xpose.msra.mxu0 0.0
    %968 = vmatpush.xpose.msra.mxu0 0.0
    %969 = vmatpush.xpose.msra.mxu0 0.0
    %970 = vmatpush.xpose.msra.mxu0 0.0
    %971 = vmatpush.xpose.msra.mxu0 0.0
    %972 = vmatpush.xpose.msra.mxu0 0.0
    %973 = vmatpush.xpose.msra.mxu0 0.0
    %974 = vmatpush.xpose.msra.mxu0 0.0
    %975 = vmatpush.xpose.msra.mxu0 0.0
    %976 = vmatpush.xpose.msra.mxu0 %v960
    %977 = vmatpush.xpose.msra.mxu0 %v957
    %978 = vmatmul.f32.gmra.mxu0 %v954
    %v979 = vpop.f32.mrf.mxu0
    %v980 = vadd.f32 0.0, %v979
    %981 = vdwg.mxu0
    %v983 = vsel %vm240, %v900, 0
    %v986 = vsel %vm240, %v946, 0
    %v989 = vsel %vm240, %v949, 0
    %991 = vmatpush.xpose.msra.mxu0 0.0
    %992 = vmatpush.xpose.msra.mxu0 0.0
    %993 = vmatpush.xpose.msra.mxu0 0.0
    %994 = vmatpush.xpose.msra.mxu0 0.0
    %995 = vmatpush.xpose.msra.mxu0 0.0
    %996 = vmatpush.xpose.msra.mxu0 0.0
    %997 = vmatpush.xpose.msra.mxu0 0.0
    %998 = vmatpush.xpose.msra.mxu0 0.0
    %999 = vmatpush.xpose.msra.mxu0 0.0
    %1000 = vmatpush.xpose.msra.mxu0 0.0
    %1001 = vmatpush.xpose.msra.mxu0 0.0
    %1002 = vmatpush.xpose.msra.mxu0 0.0
    %1003 = vmatpush.xpose.msra.mxu0 0.0
    %1004 = vmatpush.xpose.msra.mxu0 0.0
    %1005 = vmatpush.xpose.msra.mxu0 %v989
    %1006 = vmatpush.xpose.msra.mxu0 %v986
    %1007 = vmatmul.f32.gmra.mxu0 %v983
    %v1008 = vpop.f32.mrf.mxu0
    %v1009 = vadd.f32 0.0, %v1008
    %1010 = vdwg.mxu0
    %v1011 = vmul.f32 %v980, 0.35355338
    %v1012 = vmul.f32 %v1009, 0.35355338
    %v1013 = vadd.f32 %v1011, %v951
    %v1014 = vadd.f32 %v1012, %v952
    %v1015 = vsel %vm806, %v1013, -inf
    %1016 = vmax.xlane.f32.xlu0 %v1015
    %v1017 = vpop.xlane.xlu0 %1016
    %v1018 = vsel %vm806, %v1014, -inf
    %1019 = vmax.xlane.f32.xlu0 %v1018
    %v1020 = vpop.xlane.xlu0 %1019
    %v1021 = vsub.f32 %v1013, %v1017
    %v1022 = vsub.f32 %v1014, %v1020
    %v1023 = vmul.f32 %v1021, 1.442695
    %v1024 = vpow.pop %v1023
    %v1025 = vmul.f32 %v1022, 1.442695
    %v1026 = vpow.pop %v1025
    %v1027 = vsel %vm806, %v1024, 0.0
    %1028 = vadd.xlane.f32.xlu0 %v1027
    %v1029 = vpop.xlane.xlu0 %1028
    %v1030 = vsel %vm806, %v1026, 0.0
    %1031 = vadd.xlane.f32.xlu0 %v1030
    %v1032 = vpop.xlane.xlu0 %1031
    %v1033 = vrcp.pop %v1029
    %v1034 = vrcp.pop %v1032
    %v1035 = vmul.f32 %v1024, %v1033
    %v1036 = vmul.f32 %v1026, %v1034
    %v1037 = vadd.f32 %v1035, 0.0
    %v1038 = vadd.f32 %v1036, 0.0
    %1039 = vrot.lane.b32.xlu0 %v940, 96
    %v1040 = vpop.permute.xlu0 %1039
    %1041 = vrot.lane.b32.xlu0 %v943, 96
    %v1042 = vpop.permute.xlu0 %1041
    %v1046 = vsel %vm806, %v1035, 0
    %1048 = vmatpush.msra.mxu0 0.0
    %1049 = vmatpush.msra.mxu0 0.0
    %1050 = vmatpush.msra.mxu0 0.0
    %1051 = vmatpush.msra.mxu0 0.0
    %1052 = vmatpush.msra.mxu0 0.0
    %1053 = vmatpush.msra.mxu0 0.0
    %1054 = vmatpush.msra.mxu0 0.0
    %1055 = vmatpush.msra.mxu0 0.0
    %1056 = vmatpush.msra.mxu0 0.0
    %1057 = vmatpush.msra.mxu0 0.0
    %1058 = vmatpush.msra.mxu0 0.0
    %1059 = vmatpush.msra.mxu0 0.0
    %1060 = vmatpush.msra.mxu0 0.0
    %1061 = vmatpush.msra.mxu0 0.0
    %1062 = vmatpush.msra.mxu0 %v1042
    %1063 = vmatpush.msra.mxu0 %v1040
    %1064 = vmatmul.f32.gmra.mxu0 %v1046
    %v1065 = vpop.f32.mrf.mxu0
    %v1066 = vadd.f32 0.0, %v1065
    %1067 = vdwg.mxu0
    %1068 = vrot.lane.b32.xlu0 %v946, 96
    %v1069 = vpop.permute.xlu0 %1068
    %1070 = vrot.lane.b32.xlu0 %v949, 96
    %v1071 = vpop.permute.xlu0 %1070
    %v1075 = vsel %vm806, %v1036, 0
    %1077 = vmatpush.msra.mxu0 0.0
    %1078 = vmatpush.msra.mxu0 0.0
    %1079 = vmatpush.msra.mxu0 0.0
    %1080 = vmatpush.msra.mxu0 0.0
    %1081 = vmatpush.msra.mxu0 0.0
    %1082 = vmatpush.msra.mxu0 0.0
    %1083 = vmatpush.msra.mxu0 0.0
    %1084 = vmatpush.msra.mxu0 0.0
    %1085 = vmatpush.msra.mxu0 0.0
    %1086 = vmatpush.msra.mxu0 0.0
    %1087 = vmatpush.msra.mxu0 0.0
    %1088 = vmatpush.msra.mxu0 0.0
    %1089 = vmatpush.msra.mxu0 0.0
    %1090 = vmatpush.msra.mxu0 0.0
    %1091 = vmatpush.msra.mxu0 %v1071
    %1092 = vmatpush.msra.mxu0 %v1069
    %1093 = vmatmul.f32.gmra.mxu0 %v1075
    %v1094 = vpop.f32.mrf.mxu0
    %v1095 = vadd.f32 0.0, %v1094
    %1096 = vdwg.mxu0
    %1097 = vrot.lane.b32.xlu0 %v897, 120
    %v1098 = vpop.permute.xlu0 %1097
    %1099 = vrot.lane.b32.xlu0 %v940, 120
    %v1100 = vpop.permute.xlu0 %1099
    %1101 = vrot.lane.b32.xlu0 %v943, 120
    %v1102 = vpop.permute.xlu0 %1101
    %v1103 = vsel %vm240, %v1098, 0
    %v1105 = vsel %vm240, %v1100, 0
    %v1107 = vsel %vm240, %v1102, 0
    %1109 = vmatpush.xpose.msra.mxu0 0.0
    %1110 = vmatpush.xpose.msra.mxu0 0.0
    %1111 = vmatpush.xpose.msra.mxu0 0.0
    %1112 = vmatpush.xpose.msra.mxu0 0.0
    %1113 = vmatpush.xpose.msra.mxu0 0.0
    %1114 = vmatpush.xpose.msra.mxu0 0.0
    %1115 = vmatpush.xpose.msra.mxu0 0.0
    %1116 = vmatpush.xpose.msra.mxu0 0.0
    %1117 = vmatpush.xpose.msra.mxu0 0.0
    %1118 = vmatpush.xpose.msra.mxu0 0.0
    %1119 = vmatpush.xpose.msra.mxu0 0.0
    %1120 = vmatpush.xpose.msra.mxu0 0.0
    %1121 = vmatpush.xpose.msra.mxu0 0.0
    %1122 = vmatpush.xpose.msra.mxu0 0.0
    %1123 = vmatpush.xpose.msra.mxu0 %v1107
    %1124 = vmatpush.xpose.msra.mxu0 %v1105
    %1125 = vmatmul.f32.gmra.mxu0 %v1103
    %v1126 = vpop.f32.mrf.mxu0
    %v1127 = vadd.f32 0.0, %v1126
    %1128 = vdwg.mxu0
    %1129 = vrot.lane.b32.xlu0 %v900, 120
    %v1130 = vpop.permute.xlu0 %1129
    %1131 = vrot.lane.b32.xlu0 %v946, 120
    %v1132 = vpop.permute.xlu0 %1131
    %1133 = vrot.lane.b32.xlu0 %v949, 120
    %v1134 = vpop.permute.xlu0 %1133
    %v1135 = vsel %vm240, %v1130, 0
    %v1137 = vsel %vm240, %v1132, 0
    %v1139 = vsel %vm240, %v1134, 0
    %1141 = vmatpush.xpose.msra.mxu0 0.0
    %1142 = vmatpush.xpose.msra.mxu0 0.0
    %1143 = vmatpush.xpose.msra.mxu0 0.0
    %1144 = vmatpush.xpose.msra.mxu0 0.0
    %1145 = vmatpush.xpose.msra.mxu0 0.0
    %1146 = vmatpush.xpose.msra.mxu0 0.0
    %1147 = vmatpush.xpose.msra.mxu0 0.0
    %1148 = vmatpush.xpose.msra.mxu0 0.0
    %1149 = vmatpush.xpose.msra.mxu0 0.0
    %1150 = vmatpush.xpose.msra.mxu0 0.0
    %1151 = vmatpush.xpose.msra.mxu0 0.0
    %1152 = vmatpush.xpose.msra.mxu0 0.0
    %1153 = vmatpush.xpose.msra.mxu0 0.0
    %1154 = vmatpush.xpose.msra.mxu0 0.0
    %1155 = vmatpush.xpose.msra.mxu0 %v1139
    %1156 = vmatpush.xpose.msra.mxu0 %v1137
    %1157 = vmatmul.f32.gmra.mxu0 %v1135
    %v1158 = vpop.f32.mrf.mxu0
    %v1159 = vadd.f32 0.0, %v1158
    %1160 = vdwg.mxu0
    %v1161 = vmul.f32 %v1127, 0.35355338
    %v1162 = vmul.f32 %v1159, 0.35355338
    %v1163 = vadd.f32 %v1161, %v951
    %v1164 = vadd.f32 %v1162, %v952
    %v1165 = vsel %vm806, %v1163, -inf
    %1166 = vmax.xlane.f32.xlu0 %v1165
    %v1167 = vpop.xlane.xlu0 %1166
    %v1168 = vsel %vm806, %v1164, -inf
    %1169 = vmax.xlane.f32.xlu0 %v1168
    %v1170 = vpop.xlane.xlu0 %1169
    %v1171 = vsub.f32 %v1163, %v1167
    %v1172 = vsub.f32 %v1164, %v1170
    %v1173 = vmul.f32 %v1171, 1.442695
    %v1174 = vpow.pop %v1173
    %v1175 = vmul.f32 %v1172, 1.442695
    %v1176 = vpow.pop %v1175
    %v1177 = vsel %vm806, %v1174, 0.0
    %1178 = vadd.xlane.f32.xlu0 %v1177
    %v1179 = vpop.xlane.xlu0 %1178
    %v1180 = vsel %vm806, %v1176, 0.0
    %1181 = vadd.xlane.f32.xlu0 %v1180
    %v1182 = vpop.xlane.xlu0 %1181
    %v1183 = vrcp.pop %v1179
    %v1184 = vrcp.pop %v1182
    %v1185 = vmul.f32 %v1174, %v1183
    %v1186 = vmul.f32 %v1176, %v1184
    %v1187 = vadd.f32 %v1037, %v1185
    %v1188 = vadd.f32 %v1038, %v1186
    %1189 = vrot.lane.b32.xlu0 %v940, 88
    %v1190 = vpop.permute.xlu0 %1189
    %1191 = vrot.lane.b32.xlu0 %v943, 88
    %v1192 = vpop.permute.xlu0 %1191
    %v1196 = vsel %vm806, %v1185, 0
    %1198 = vmatpush.msra.mxu0 0.0
    %1199 = vmatpush.msra.mxu0 0.0
    %1200 = vmatpush.msra.mxu0 0.0
    %1201 = vmatpush.msra.mxu0 0.0
    %1202 = vmatpush.msra.mxu0 0.0
    %1203 = vmatpush.msra.mxu0 0.0
    %1204 = vmatpush.msra.mxu0 0.0
    %1205 = vmatpush.msra.mxu0 0.0
    %1206 = vmatpush.msra.mxu0 0.0
    %1207 = vmatpush.msra.mxu0 0.0
    %1208 = vmatpush.msra.mxu0 0.0
    %1209 = vmatpush.msra.mxu0 0.0
    %1210 = vmatpush.msra.mxu0 0.0
    %1211 = vmatpush.msra.mxu0 0.0
    %1212 = vmatpush.msra.mxu0 %v1192
    %1213 = vmatpush.msra.mxu0 %v1190
    %1214 = vmatmul.f32.gmra.mxu0 %v1196
    %v1215 = vpop.f32.mrf.mxu0
    %v1216 = vadd.f32 0.0, %v1215
    %1217 = vdwg.mxu0
    %1218 = vrot.lane.b32.xlu0 %v946, 88
    %v1219 = vpop.permute.xlu0 %1218
    %1220 = vrot.lane.b32.xlu0 %v949, 88
    %v1221 = vpop.permute.xlu0 %1220
    %v1225 = vsel %vm806, %v1186, 0
    %1227 = vmatpush.msra.mxu0 0.0
    %1228 = vmatpush.msra.mxu0 0.0
    %1229 = vmatpush.msra.mxu0 0.0
    %1230 = vmatpush.msra.mxu0 0.0
    %1231 = vmatpush.msra.mxu0 0.0
    %1232 = vmatpush.msra.mxu0 0.0
    %1233 = vmatpush.msra.mxu0 0.0
    %1234 = vmatpush.msra.mxu0 0.0
    %1235 = vmatpush.msra.mxu0 0.0
    %1236 = vmatpush.msra.mxu0 0.0
    %1237 = vmatpush.msra.mxu0 0.0
    %1238 = vmatpush.msra.mxu0 0.0
    %1239 = vmatpush.msra.mxu0 0.0
    %1240 = vmatpush.msra.mxu0 0.0
    %1241 = vmatpush.msra.mxu0 %v1221
    %1242 = vmatpush.msra.mxu0 %v1219
    %1243 = vmatmul.f32.gmra.mxu0 %v1225
    %v1244 = vpop.f32.mrf.mxu0
    %v1245 = vadd.f32 0.0, %v1244
    %1246 = vdwg.mxu0
    %1247 = vrot.lane.b32.xlu0 %v897, 112
    %v1248 = vpop.permute.xlu0 %1247
    %1249 = vrot.lane.b32.xlu0 %v940, 112
    %v1250 = vpop.permute.xlu0 %1249
    %1251 = vrot.lane.b32.xlu0 %v943, 112
    %v1252 = vpop.permute.xlu0 %1251
    %v1253 = vsel %vm240, %v1248, 0
    %v1255 = vsel %vm240, %v1250, 0
    %v1257 = vsel %vm240, %v1252, 0
    %1259 = vmatpush.xpose.msra.mxu0 0.0
    %1260 = vmatpush.xpose.msra.mxu0 0.0
    %1261 = vmatpush.xpose.msra.mxu0 0.0
    %1262 = vmatpush.xpose.msra.mxu0 0.0
    %1263 = vmatpush.xpose.msra.mxu0 0.0
    %1264 = vmatpush.xpose.msra.mxu0 0.0
    %1265 = vmatpush.xpose.msra.mxu0 0.0
    %1266 = vmatpush.xpose.msra.mxu0 0.0
    %1267 = vmatpush.xpose.msra.mxu0 0.0
    %1268 = vmatpush.xpose.msra.mxu0 0.0
    %1269 = vmatpush.xpose.msra.mxu0 0.0
    %1270 = vmatpush.xpose.msra.mxu0 0.0
    %1271 = vmatpush.xpose.msra.mxu0 0.0
    %1272 = vmatpush.xpose.msra.mxu0 0.0
    %1273 = vmatpush.xpose.msra.mxu0 %v1257
    %1274 = vmatpush.xpose.msra.mxu0 %v1255
    %1275 = vmatmul.f32.gmra.mxu0 %v1253
    %v1276 = vpop.f32.mrf.mxu0
    %v1277 = vadd.f32 0.0, %v1276
    %1278 = vdwg.mxu0
    %1279 = vrot.lane.b32.xlu0 %v900, 112
    %v1280 = vpop.permute.xlu0 %1279
    %1281 = vrot.lane.b32.xlu0 %v946, 112
    %v1282 = vpop.permute.xlu0 %1281
    %1283 = vrot.lane.b32.xlu0 %v949, 112
    %v1284 = vpop.permute.xlu0 %1283
    %v1285 = vsel %vm240, %v1280, 0
    %v1287 = vsel %vm240, %v1282, 0
    %v1289 = vsel %vm240, %v1284, 0
    %1291 = vmatpush.xpose.msra.mxu0 0.0
    %1292 = vmatpush.xpose.msra.mxu0 0.0
    %1293 = vmatpush.xpose.msra.mxu0 0.0
    %1294 = vmatpush.xpose.msra.mxu0 0.0
    %1295 = vmatpush.xpose.msra.mxu0 0.0
    %1296 = vmatpush.xpose.msra.mxu0 0.0
    %1297 = vmatpush.xpose.msra.mxu0 0.0
    %1298 = vmatpush.xpose.msra.mxu0 0.0
    %1299 = vmatpush.xpose.msra.mxu0 0.0
    %1300 = vmatpush.xpose.msra.mxu0 0.0
    %1301 = vmatpush.xpose.msra.mxu0 0.0
    %1302 = vmatpush.xpose.msra.mxu0 0.0
    %1303 = vmatpush.xpose.msra.mxu0 0.0
    %1304 = vmatpush.xpose.msra.mxu0 0.0
    %1305 = vmatpush.xpose.msra.mxu0 %v1289
    %1306 = vmatpush.xpose.msra.mxu0 %v1287
    %1307 = vmatmul.f32.gmra.mxu0 %v1285
    %v1308 = vpop.f32.mrf.mxu0
    %v1309 = vadd.f32 0.0, %v1308
    %1310 = vdwg.mxu0
    %v1311 = vmul.f32 %v1277, 0.35355338
    %v1312 = vmul.f32 %v1309, 0.35355338
    %v1313 = vadd.f32 %v1311, %v951
    %v1314 = vadd.f32 %v1312, %v952
    %v1315 = vsel %vm806, %v1313, -inf
    %1316 = vmax.xlane.f32.xlu0 %v1315
    %v1317 = vpop.xlane.xlu0 %1316
    %v1318 = vsel %vm806, %v1314, -inf
    %1319 = vmax.xlane.f32.xlu0 %v1318
    %v1320 = vpop.xlane.xlu0 %1319
    %v1321 = vsub.f32 %v1313, %v1317
    %v1322 = vsub.f32 %v1314, %v1320
    %v1323 = vmul.f32 %v1321, 1.442695
    %v1324 = vpow.pop %v1323
    %v1325 = vmul.f32 %v1322, 1.442695
    %v1326 = vpow.pop %v1325
    %v1327 = vsel %vm806, %v1324, 0.0
    %1328 = vadd.xlane.f32.xlu0 %v1327
    %v1329 = vpop.xlane.xlu0 %1328
    %v1330 = vsel %vm806, %v1326, 0.0
    %1331 = vadd.xlane.f32.xlu0 %v1330
    %v1332 = vpop.xlane.xlu0 %1331
    %v1333 = vrcp.pop %v1329
    %v1334 = vrcp.pop %v1332
    %v1335 = vmul.f32 %v1324, %v1333
    %v1336 = vmul.f32 %v1326, %v1334
    %v1337 = vadd.f32 %v1187, %v1335
    %v1338 = vadd.f32 %v1188, %v1336
    %1339 = vrot.lane.b32.xlu0 %v940, 80
    %v1340 = vpop.permute.xlu0 %1339
    %1341 = vrot.lane.b32.xlu0 %v943, 80
    %v1342 = vpop.permute.xlu0 %1341
    %v1346 = vsel %vm806, %v1335, 0
    %1348 = vmatpush.msra.mxu0 0.0
    %1349 = vmatpush.msra.mxu0 0.0
    %1350 = vmatpush.msra.mxu0 0.0
    %1351 = vmatpush.msra.mxu0 0.0
    %1352 = vmatpush.msra.mxu0 0.0
    %1353 = vmatpush.msra.mxu0 0.0
    %1354 = vmatpush.msra.mxu0 0.0
    %1355 = vmatpush.msra.mxu0 0.0
    %1356 = vmatpush.msra.mxu0 0.0
    %1357 = vmatpush.msra.mxu0 0.0
    %1358 = vmatpush.msra.mxu0 0.0
    %1359 = vmatpush.msra.mxu0 0.0
    %1360 = vmatpush.msra.mxu0 0.0
    %1361 = vmatpush.msra.mxu0 0.0
    %1362 = vmatpush.msra.mxu0 %v1342
    %1363 = vmatpush.msra.mxu0 %v1340
    %1364 = vmatmul.f32.gmra.mxu0 %v1346
    %v1365 = vpop.f32.mrf.mxu0
    %v1366 = vadd.f32 0.0, %v1365
    %1367 = vdwg.mxu0
    %1368 = vrot.lane.b32.xlu0 %v946, 80
    %v1369 = vpop.permute.xlu0 %1368
    %1370 = vrot.lane.b32.xlu0 %v949, 80
    %v1371 = vpop.permute.xlu0 %1370
    %v1375 = vsel %vm806, %v1336, 0
    %1377 = vmatpush.msra.mxu0 0.0
    %1378 = vmatpush.msra.mxu0 0.0
    %1379 = vmatpush.msra.mxu0 0.0
    %1380 = vmatpush.msra.mxu0 0.0
    %1381 = vmatpush.msra.mxu0 0.0
    %1382 = vmatpush.msra.mxu0 0.0
    %1383 = vmatpush.msra.mxu0 0.0
    %1384 = vmatpush.msra.mxu0 0.0
    %1385 = vmatpush.msra.mxu0 0.0
    %1386 = vmatpush.msra.mxu0 0.0
    %1387 = vmatpush.msra.mxu0 0.0
    %1388 = vmatpush.msra.mxu0 0.0
    %1389 = vmatpush.msra.mxu0 0.0
    %1390 = vmatpush.msra.mxu0 0.0
    %1391 = vmatpush.msra.mxu0 %v1371
    %1392 = vmatpush.msra.mxu0 %v1369
    %1393 = vmatmul.f32.gmra.mxu0 %v1375
    %v1394 = vpop.f32.mrf.mxu0
    %v1395 = vadd.f32 0.0, %v1394
    %1396 = vdwg.mxu0
    %1397 = vrot.lane.b32.xlu0 %v897, 104
    %v1398 = vpop.permute.xlu0 %1397
    %1399 = vrot.lane.b32.xlu0 %v940, 104
    %v1400 = vpop.permute.xlu0 %1399
    %1401 = vrot.lane.b32.xlu0 %v943, 104
    %v1402 = vpop.permute.xlu0 %1401
    %v1403 = vsel %vm240, %v1398, 0
    %v1405 = vsel %vm240, %v1400, 0
    %v1407 = vsel %vm240, %v1402, 0
    %1409 = vmatpush.xpose.msra.mxu0 0.0
    %1410 = vmatpush.xpose.msra.mxu0 0.0
    %1411 = vmatpush.xpose.msra.mxu0 0.0
    %1412 = vmatpush.xpose.msra.mxu0 0.0
    %1413 = vmatpush.xpose.msra.mxu0 0.0
    %1414 = vmatpush.xpose.msra.mxu0 0.0
    %1415 = vmatpush.xpose.msra.mxu0 0.0
    %1416 = vmatpush.xpose.msra.mxu0 0.0
    %1417 = vmatpush.xpose.msra.mxu0 0.0
    %1418 = vmatpush.xpose.msra.mxu0 0.0
    %1419 = vmatpush.xpose.msra.mxu0 0.0
    %1420 = vmatpush.xpose.msra.mxu0 0.0
    %1421 = vmatpush.xpose.msra.mxu0 0.0
    %1422 = vmatpush.xpose.msra.mxu0 0.0
    %1423 = vmatpush.xpose.msra.mxu0 %v1407
    %1424 = vmatpush.xpose.msra.mxu0 %v1405
    %1425 = vmatmul.f32.gmra.mxu0 %v1403
    %v1426 = vpop.f32.mrf.mxu0
    %v1427 = vadd.f32 0.0, %v1426
    %1428 = vdwg.mxu0
    %1429 = vrot.lane.b32.xlu0 %v900, 104
    %v1430 = vpop.permute.xlu0 %1429
    %1431 = vrot.lane.b32.xlu0 %v946, 104
    %v1432 = vpop.permute.xlu0 %1431
    %1433 = vrot.lane.b32.xlu0 %v949, 104
    %v1434 = vpop.permute.xlu0 %1433
    %v1435 = vsel %vm240, %v1430, 0
    %v1437 = vsel %vm240, %v1432, 0
    %v1439 = vsel %vm240, %v1434, 0
    %1441 = vmatpush.xpose.msra.mxu0 0.0
    %1442 = vmatpush.xpose.msra.mxu0 0.0
    %1443 = vmatpush.xpose.msra.mxu0 0.0
    %1444 = vmatpush.xpose.msra.mxu0 0.0
    %1445 = vmatpush.xpose.msra.mxu0 0.0
    %1446 = vmatpush.xpose.msra.mxu0 0.0
    %1447 = vmatpush.xpose.msra.mxu0 0.0
    %1448 = vmatpush.xpose.msra.mxu0 0.0
    %1449 = vmatpush.xpose.msra.mxu0 0.0
    %1450 = vmatpush.xpose.msra.mxu0 0.0
    %1451 = vmatpush.xpose.msra.mxu0 0.0
    %1452 = vmatpush.xpose.msra.mxu0 0.0
    %1453 = vmatpush.xpose.msra.mxu0 0.0
    %1454 = vmatpush.xpose.msra.mxu0 0.0
    %1455 = vmatpush.xpose.msra.mxu0 %v1439
    %1456 = vmatpush.xpose.msra.mxu0 %v1437
    %1457 = vmatmul.f32.gmra.mxu0 %v1435
    %v1458 = vpop.f32.mrf.mxu0
    %v1459 = vadd.f32 0.0, %v1458
    %1460 = vdwg.mxu0
    %v1461 = vmul.f32 %v1427, 0.35355338
    %v1462 = vmul.f32 %v1459, 0.35355338
    %v1463 = vadd.f32 %v1461, %v951
    %v1464 = vadd.f32 %v1462, %v952
    %v1465 = vsel %vm806, %v1463, -inf
    %1466 = vmax.xlane.f32.xlu0 %v1465
    %v1467 = vpop.xlane.xlu0 %1466
    %v1468 = vsel %vm806, %v1464, -inf
    %1469 = vmax.xlane.f32.xlu0 %v1468
    %v1470 = vpop.xlane.xlu0 %1469
    %v1471 = vsub.f32 %v1463, %v1467
    %v1472 = vsub.f32 %v1464, %v1470
    %v1473 = vmul.f32 %v1471, 1.442695
    %v1474 = vpow.pop %v1473
    %v1475 = vmul.f32 %v1472, 1.442695
    %v1476 = vpow.pop %v1475
    %v1477 = vsel %vm806, %v1474, 0.0
    %1478 = vadd.xlane.f32.xlu0 %v1477
    %v1479 = vpop.xlane.xlu0 %1478
    %v1480 = vsel %vm806, %v1476, 0.0
    %1481 = vadd.xlane.f32.xlu0 %v1480
    %v1482 = vpop.xlane.xlu0 %1481
    %v1483 = vrcp.pop %v1479
    %v1484 = vrcp.pop %v1482
    %v1485 = vmul.f32 %v1474, %v1483
    %v1486 = vmul.f32 %v1476, %v1484
    %v1487 = vadd.f32 %v1337, %v1485
    %v1488 = vadd.f32 %v1338, %v1486
    %1489 = vrot.lane.b32.xlu0 %v940, 72
    %v1490 = vpop.permute.xlu0 %1489
    %1491 = vrot.lane.b32.xlu0 %v943, 72
    %v1492 = vpop.permute.xlu0 %1491
    %v1496 = vsel %vm806, %v1485, 0
    %1498 = vmatpush.msra.mxu0 0.0
    %1499 = vmatpush.msra.mxu0 0.0
    %1500 = vmatpush.msra.mxu0 0.0
    %1501 = vmatpush.msra.mxu0 0.0
    %1502 = vmatpush.msra.mxu0 0.0
    %1503 = vmatpush.msra.mxu0 0.0
    %1504 = vmatpush.msra.mxu0 0.0
    %1505 = vmatpush.msra.mxu0 0.0
    %1506 = vmatpush.msra.mxu0 0.0
    %1507 = vmatpush.msra.mxu0 0.0
    %1508 = vmatpush.msra.mxu0 0.0
    %1509 = vmatpush.msra.mxu0 0.0
    %1510 = vmatpush.msra.mxu0 0.0
    %1511 = vmatpush.msra.mxu0 0.0
    %1512 = vmatpush.msra.mxu0 %v1492
    %1513 = vmatpush.msra.mxu0 %v1490
    %1514 = vmatmul.f32.gmra.mxu0 %v1496
    %v1515 = vpop.f32.mrf.mxu0
    %v1516 = vadd.f32 0.0, %v1515
    %1517 = vdwg.mxu0
    %1518 = vrot.lane.b32.xlu0 %v946, 72
    %v1519 = vpop.permute.xlu0 %1518
    %1520 = vrot.lane.b32.xlu0 %v949, 72
    %v1521 = vpop.permute.xlu0 %1520
    %v1525 = vsel %vm806, %v1486, 0
    %1527 = vmatpush.msra.mxu0 0.0
    %1528 = vmatpush.msra.mxu0 0.0
    %1529 = vmatpush.msra.mxu0 0.0
    %1530 = vmatpush.msra.mxu0 0.0
    %1531 = vmatpush.msra.mxu0 0.0
    %1532 = vmatpush.msra.mxu0 0.0
    %1533 = vmatpush.msra.mxu0 0.0
    %1534 = vmatpush.msra.mxu0 0.0
    %1535 = vmatpush.msra.mxu0 0.0
    %1536 = vmatpush.msra.mxu0 0.0
    %1537 = vmatpush.msra.mxu0 0.0
    %1538 = vmatpush.msra.mxu0 0.0
    %1539 = vmatpush.msra.mxu0 0.0
    %1540 = vmatpush.msra.mxu0 0.0
    %1541 = vmatpush.msra.mxu0 %v1521
    %1542 = vmatpush.msra.mxu0 %v1519
    %1543 = vmatmul.f32.gmra.mxu0 %v1525
    %v1544 = vpop.f32.mrf.mxu0
    %v1545 = vadd.f32 0.0, %v1544
    %1546 = vdwg.mxu0
    %1549 = vrot.lane.b32.xlu0 %v1216, 8
    %v1550 = vpop.permute.xlu0 %1549
    %1551 = vrot.lane.b32.xlu0 %v1245, 8
    %v1552 = vpop.permute.xlu0 %1551
    %1557 = vrot.lane.b32.xlu0 %v1366, 16
    %v1558 = vpop.permute.xlu0 %1557
    %1559 = vrot.lane.b32.xlu0 %v1395, 16
    %v1560 = vpop.permute.xlu0 %1559
    %1565 = vrot.lane.b32.xlu0 %v1516, 24
    %v1566 = vpop.permute.xlu0 %1565
    %1567 = vrot.lane.b32.xlu0 %v1545, 24
    %v1568 = vpop.permute.xlu0 %1567
    %v1571 = vsel %vm240, %v1066, %v1550
    %v1572 = vsel %vm240, %v1095, %v1552
    %v1573 = vsel %vm806, %v1571, %v1558
    %v1574 = vsel %vm806, %v1572, %v1560
    %v1575 = vsel %vm809, %v1573, %v1566
    %v1576 = vsel %vm809, %v1574, %v1568
    %v1577 = vmul.f32 %v1487, 0.25
    %v1578 = vmul.f32 %v1488, 0.25
    %v1579 = vld [vmem:[#allocation11] sm:$0xff]
    %v1580 = vld [vmem:[#allocation11 + $0x8] sm:$0xff]
    %v1581 = vld [vmem:[#allocation11 + $0x10] sm:$0xff]
    %v1582 = vld [vmem:[#allocation11 + $0x18] sm:$0xff]
    %v1583 = vld [vmem:[%s13] sm:$0x1]
    %v1585 = vperm.slane %v1583, 0
    %v1588 = vsel %vm205, %v1575, 0
    %v1591 = vsel %vm205, %v1576, 0
    %1593 = vmatpush.msra.mxu0 0.0
    %1594 = vmatpush.msra.mxu0 0.0
    %1595 = vmatpush.msra.mxu0 0.0
    %1596 = vmatpush.msra.mxu0 0.0
    %1597 = vmatpush.msra.mxu0 0.0
    %1598 = vmatpush.msra.mxu0 0.0
    %1599 = vmatpush.msra.mxu0 0.0
    %1600 = vmatpush.msra.mxu0 0.0
    %1601 = vmatpush.msra.mxu0 0.0
    %1602 = vmatpush.msra.mxu0 0.0
    %1603 = vmatpush.msra.mxu0 0.0
    %1604 = vmatpush.msra.mxu0 0.0
    %1605 = vmatpush.msra.mxu0 %v1582
    %1606 = vmatpush.msra.mxu0 %v1581
    %1607 = vmatpush.msra.mxu0 %v1580
    %1608 = vmatpush.msra.mxu0 %v1579
    %1609 = vmatmul.f32.gmra.mxu0 %v1588
    %v1610 = vpop.f32.mrf.mxu0
    %v1611 = vadd.f32 %v1585, %v1610
    %1612 = vmatmul.f32.gmra.mxu0 %v1591
    %v1613 = vpop.f32.mrf.mxu0
    %v1614 = vadd.f32 %v1585, %v1613
    %1615 = vdwg.mxu0
    %v1616 = vadd.f32 %v863, %v1611
    %v1617 = vadd.f32 %v864, %v1614
    %v1618 = vld [vmem:[%s20] sm:$0x1]
    %v1620 = vperm.slane %v1618, 0
    %v1622 = vmul.f32 %v1616, %v1620
    %v1623 = vmul.f32 %v1617, %v1620
    %v1624 = vld [vmem:[%s21] sm:$0x1]
    %v1626 = vperm.slane %v1624, 0
    %v1628 = vadd.f32 %v1622, %v1626
    %v1629 = vadd.f32 %v1623, %v1626
    %v1630 = vld [vmem:[#allocation13] sm:$0xff]
    %v1631 = vld [vmem:[#allocation13 + $0x8] sm:$0xff]
    %v1632 = vld [vmem:[#allocation13 + $0x10] sm:$0xff]
    %v1633 = vld [vmem:[#allocation13 + $0x18] sm:$0xff]
    %v1634 = vld [vmem:[%s15] sm:$0x1]
    %v1636 = vperm.slane %v1634, 0
    %v1639 = vsel %vm205, %v1628, 0
    %v1642 = vsel %vm205, %v1629, 0
    %1644 = vmatpush.msra.mxu0 0.0
    %1645 = vmatpush.msra.mxu0 0.0
    %1646 = vmatpush.msra.mxu0 0.0
    %1647 = vmatpush.msra.mxu0 0.0
    %1648 = vmatpush.msra.mxu0 0.0
    %1649 = vmatpush.msra.mxu0 0.0
    %1650 = vmatpush.msra.mxu0 0.0
    %1651 = vmatpush.msra.mxu0 0.0
    %1652 = vmatpush.msra.mxu0 0.0
    %1653 = vmatpush.msra.mxu0 0.0
    %1654 = vmatpush.msra.mxu0 0.0
    %1655 = vmatpush.msra.mxu0 0.0
    %1656 = vmatpush.msra.mxu0 %v1633
    %1657 = vmatpush.msra.mxu0 %v1632
    %1658 = vmatpush.msra.mxu0 %v1631
    %1659 = vmatpush.msra.mxu0 %v1630
    %1660 = vmatmul.f32.gmra.mxu0 %v1639
    %v1661 = vpop.f32.mrf.mxu0
    %v1662 = vadd.f32 %v1636, %v1661
    %1663 = vmatmul.f32.gmra.mxu0 %v1642
    %v1664 = vpop.f32.mrf.mxu0
    %v1665 = vadd.f32 %v1636, %v1664
    %1666 = vdwg.mxu0
    %v1667 = vmax.f32 %v1662, 0.0
    %v1668 = vmax.f32 %v1665, 0.0
    %v1669 = vld [vmem:[%s16] sm:$0xff]
    %v1670 = vld [vmem:[%s16 + $0x8] sm:$0xff]
    %v1671 = vld [vmem:[%s16 + $0x10] sm:$0xff]
    %v1672 = vld [vmem:[%s16 + $0x18] sm:$0xff]
    %v1673 = vld [vmem:[%s16 + $0x20] sm:$0xff]
    %v1674 = vld [vmem:[%s16 + $0x28] sm:$0xff]
    %v1675 = vld [vmem:[%s16 + $0x30] sm:$0xff]
    %v1676 = vld [vmem:[%s16 + $0x38] sm:$0xff]
    %v1677 = vld [vmem:[%s17] sm:$0x1]
    %v1679 = vperm.slane %v1677, 0
    %vm1681 = vcmask 523264
    %v1683 = vsel %vm1681, %v1667, 0
    %v1686 = vsel %vm1681, %v1668, 0
    %1688 = vmatpush.msra.mxu0 0.0
    %1689 = vmatpush.msra.mxu0 0.0
    %1690 = vmatpush.msra.mxu0 0.0
    %1691 = vmatpush.msra.mxu0 0.0
    %1692 = vmatpush.msra.mxu0 0.0
    %1693 = vmatpush.msra.mxu0 0.0
    %1694 = vmatpush.msra.mxu0 0.0
    %1695 = vmatpush.msra.mxu0 0.0
    %1696 = vmatpush.msra.mxu0 %v1676
    %1697 = vmatpush.msra.mxu0 %v1675
    %1698 = vmatpush.msra.mxu0 %v1674
    %1699 = vmatpush.msra.mxu0 %v1673
    %1700 = vmatpush.msra.mxu0 %v1672
    %1701 = vmatpush.msra.mxu0 %v1671
    %1702 = vmatpush.msra.mxu0 %v1670
    %1703 = vmatpush.msra.mxu0 %v1669
    %1704 = vmatmul.f32.gmra.mxu0 %v1683
    %v1705 = vpop.f32.mrf.mxu0
    %v1706 = vadd.f32 %v1679, %v1705
    %1707 = vmatmul.f32.gmra.mxu0 %v1686
    %v1708 = vpop.f32.mrf.mxu0
    %v1709 = vadd.f32 %v1679, %v1708
    %1710 = vdwg.mxu0
    %v1711 = vmax.f32 %v1706, 0.0
    %v1712 = vmax.f32 %v1709, 0.0
    %v1713 = vadd.f32 %v1628, %v1711
    %v1714 = vadd.f32 %v1629, %v1712
    %v1715 = vld [vmem:[%s22] sm:$0x1]
    %v1717 = vperm.slane %v1715, 0
    %v1719 = vmul.f32 %v1713, %v1717
    %v1720 = vmul.f32 %v1714, %v1717
    %v1721 = vld [vmem:[%s23] sm:$0x1]
    %v1723 = vperm.slane %v1721, 0
    %v1725 = vadd.f32 %v1719, %v1723
    %v1726 = vadd.f32 %v1720, %v1723
    %1727 = vst.msk [vmem:[#allocation14] sm:$0xff] %vm205, %v1725
    %1728 = vst.msk [vmem:[#allocation14 + $0x8] sm:$0xff] %vm205, %v1726
    %1729 = vst.msk [vmem:[#allocation15] sm:$0xff] %vm240, %v812
    %1730 = vst.msk [vmem:[#allocation15 + $0x8] sm:$0xff] %vm240, %v813
    %1731 = vst.msk [vmem:[#allocation17] sm:$0xff] %vm806, %v1577
    %1732 = vst.msk [vmem:[#allocation17 + $0x8] sm:$0xff] %vm806, %v1578
    // Predicated region
    $region126: #{tpu_custom_call.1} parent=1 // pred_check
      _
    $region127: #{tpu_custom_call.1} parent=1 // pred_check_branch
      %1734 = sbr.rel (0) target = $region129
    $region128: #{tpu_custom_call.1} parent=1 // pred_region
      %1736 = vsyncadd [#allocation4], 0
      %s1737 = sshll.u32 [#allocation14], 4
      %s1738 = int_to_ptr.vmem [resolvable:$true] %s1737
      %s1739 = sshll.u32 %s24, 4
      %s1740 = int_to_ptr.hbm [resolvable:$true] %s1739
      %1745 = dma.vmem_to_hbm [thread:$0]  %s1738, 256, %s1740, [#allocation4], 128, 128, 8
    $region129: #{tpu_custom_call.1} parent=1 // pred_fallthru
      _
    // Predicated region
    $region130: #{tpu_custom_call.1} parent=1 // pred_check
      _
    $region131: #{tpu_custom_call.1} parent=1 // pred_check_branch
      %1747 = sbr.rel (0) target = $region133
    $region132: #{tpu_custom_call.1} parent=1 // pred_region
      %1749 = vsyncadd [#allocation16], 0
      %s1750 = sshll.u32 [#allocation15], 4
      %s1751 = int_to_ptr.vmem [resolvable:$true] %s1750
      %s1752 = sshll.u32 %s25, 4
      %s1753 = int_to_ptr.hbm [resolvable:$true] %s1752
      %1758 = dma.vmem_to_hbm [thread:$0]  %s1751, 256, %s1753, [#allocation16], 128, 128, 8
    $region133: #{tpu_custom_call.1} parent=1 // pred_fallthru
      _
    // Predicated region
    $region134: #{tpu_custom_call.1} parent=1 // pred_check
      _
    $region135: #{tpu_custom_call.1} parent=1 // pred_check_branch
      %1760 = sbr.rel (0) target = $region137
    $region136: #{tpu_custom_call.1} parent=1 // pred_region
      %1762 = vsyncadd [#allocation16], 0
      %s1763 = sshll.u32 [#allocation17], 4
      %s1764 = int_to_ptr.vmem [resolvable:$true] %s1763
      %s1765 = sshll.u32 %s26, 4
      %s1766 = int_to_ptr.hbm [resolvable:$true] %s1765
      %1771 = dma.vmem_to_hbm [thread:$0]  %s1764, 256, %s1766, [#allocation16], 128, 128, 8
    $region137: #{tpu_custom_call.1} parent=1 // pred_fallthru
      _
    // Predicated region
    $region138: #{tpu_custom_call.1} parent=1 // pred_check
      _
    $region139: #{tpu_custom_call.1} parent=1 // pred_check_branch
      %1773 = sbr.rel (0) target = $region141
    $region140: #{tpu_custom_call.1} parent=1 // pred_region
      %1775 = dma.done [#allocation4], 256
    $region141: #{tpu_custom_call.1} parent=1 // pred_fallthru
      _
    // Predicated region
    $region142: #{tpu_custom_call.1} parent=1 // pred_check
      _
    $region143: #{tpu_custom_call.1} parent=1 // pred_check_branch
      %1777 = sbr.rel (0) target = $region145
    $region144: #{tpu_custom_call.1} parent=1 // pred_region
      %1779 = dma.done [#allocation16], 256
    $region145: #{tpu_custom_call.1} parent=1 // pred_fallthru
      _
    // Predicated region
    $region146: #{tpu_custom_call.1} parent=1 // pred_check
      _
    $region147: #{tpu_custom_call.1} parent=1 // pred_check_branch
      %1781 = sbr.rel (0) target = $region149
    $region148: #{tpu_custom_call.1} parent=1 // pred_region
      %1783 = dma.done [#allocation16], 256
    $region149: #{tpu_custom_call.1} parent=1 // pred_fallthru
      _
    %1784 = vsyncpa [#allocation3], 1
    %1785 = vsyncpa [#allocation6], 1
    %1786 = vsyncpa [#allocation9], 1
    %1787 = vsyncpa [#allocation12], 1
    %1788 = vsyncpa [#allocation4], 1
    %1789 = vsyncpa [#allocation16], 1

</llo_original>
